<compile_context>
chip_gen: v7x
topology: tpu7x:2x2x1
jax: 0.10.0
libtpu: 0.0.40
codegen_flags: <defaults>
</compile_context>

<pallas_src>
import jax
import jax.numpy as jnp
from jax import lax
from jax.experimental import pallas as pl
from jax.experimental.pallas import tpu as pltpu

COUT_PAD = 128  # lane-dense padded output-channel width for both layers


# ---------------------------------------------------------------------------
# Pallas kernel: fused conv(as one big matmul) + folded BN + ReLU + 2x2 maxpool
# ---------------------------------------------------------------------------
def _conv_bn_relu_pool_kernel(p_ref, w_ref, scale_ref, shift_ref, o_ref):
    # p_ref:     (4*N*R, Kp)  corner-major im2col patches (corner, sample, pooled pos)
    # w_ref:     (Kp, Cp)     conv weight as matmul (zero-padded K rows / Cout cols)
    # scale_ref: (1, Cp)      folded BN scale   gamma / sqrt(var + eps)   (zero-padded)
    # shift_ref: (1, Cp)      folded BN shift   beta - mean * scale       (zero-padded)
    # o_ref:     (N*R, Cp)    pooled output, lane-dense Cp = 128
    y = jnp.dot(p_ref[...], w_ref[...],
                preferred_element_type=jnp.float32)            # single MXU push, M = 4*N*R
    y = jnp.maximum(y * scale_ref[...] + shift_ref[...], 0.0)  # BN (folded) + ReLU
    nr = o_ref.shape[0]
    # 2x2 maxpool = max over the 4 corner slabs (sublane-aligned static slices).
    o_ref[...] = jnp.maximum(jnp.maximum(y[0 * nr:1 * nr], y[1 * nr:2 * nr]),
                             jnp.maximum(y[2 * nr:3 * nr], y[3 * nr:4 * nr]))


def conv_bn_relu_pool(patches, w_mat, scale, shift):
    """patches: (4*N*R, Kp) f32; w_mat: (Kp, Cp); scale/shift: (1, Cp) -> (N*R, Cp)."""
    M, _ = patches.shape
    Cp = w_mat.shape[1]
    NR = M // 4
    vmem = pl.BlockSpec(memory_space=pltpu.MemorySpace.VMEM)
    return pl.pallas_call(
        _conv_bn_relu_pool_kernel,
        out_shape=jax.ShapeDtypeStruct((NR, Cp), jnp.float32),
        in_specs=[vmem, vmem, vmem, vmem],
        out_specs=vmem,
    )(patches, w_mat, scale, shift)


# ---------------------------------------------------------------------------
# JAX glue: im2col grouped by 2x2 pool-window corner (channels-last)
# ---------------------------------------------------------------------------
def im2col_pool_grouped(x_nhwc, k, s, p, k_pad=None):
    N, H, W, C = x_nhwc.shape
    xp = jnp.pad(x_nhwc, ((0, 0), (p, p), (p, p), (0, 0)))
    Ho = (H + 2 * p - k) // s + 1
    Wo = (W + 2 * p - k) // s + 1
    cols = []
    for kh in range(k):
        for kw in range(k):
            cols.append(xp[:, kh:kh + s * (Ho - 1) + 1:s,
                           kw:kw + s * (Wo - 1) + 1:s, :])
    K = k * k * C
    patches = jnp.stack(cols, axis=3).reshape(N, Ho, Wo, K)   # K idx = (kh*k+kw)*C + c
    Hp, Wp = Ho // 2, Wo // 2                                 # MaxPool2d(2): trim odd edge
    patches = patches[:, :Hp * 2, :Wp * 2, :]
    patches = patches.reshape(N, Hp, 2, Wp, 2, K)
    # corner-major flattening: row index = ((corner*N + n)*Hp*Wp + h*Wp + w)
    patches = patches.transpose(2, 4, 0, 1, 3, 5).reshape(4 * N * Hp * Wp, K)
    if k_pad is not None and k_pad > K:
        patches = jnp.pad(patches, ((0, 0), (0, k_pad - K)))
    return patches, Hp, Wp


def fold_bn(gamma, beta, mean, var, eps=1e-5, cout_pad=COUT_PAD):
    scale = (gamma / jnp.sqrt(var + eps)).astype(jnp.float32)
    shift = (beta - mean * scale).astype(jnp.float32)
    pad = cout_pad - scale.shape[0]
    return jnp.pad(scale, (0, pad))[None, :], jnp.pad(shift, (0, pad))[None, :]


def torch_weight_to_matmul(w_oihw, cin_pad=None, k_pad=None, cout_pad=COUT_PAD):
    # (Cout, Cin, KH, KW) -> (K, Cout_pad), K idx = (kh*KW+kw)*cin_pad + cin
    Cout, Cin, KH, KW = w_oihw.shape
    cin_pad = Cin if cin_pad is None else cin_pad
    w = w_oihw.transpose(2, 3, 1, 0).astype(jnp.float32)        # (KH, KW, Cin, Cout)
    w = jnp.pad(w, ((0, 0), (0, 0), (0, cin_pad - Cin), (0, cout_pad - Cout)))
    w = w.reshape(KH * KW * cin_pad, cout_pad)
    if k_pad is not None and k_pad > w.shape[0]:
        w = jnp.pad(w, ((0, k_pad - w.shape[0]), (0, 0)))
    return w


# ---------------------------------------------------------------------------
# Full CNN forward using the Pallas kernels
# ---------------------------------------------------------------------------
@jax.jit
def cnn_forward(x_nchw, w1, w2, bn1, bn2):
    N = x_nchw.shape[0]
    x_nhwc = x_nchw.transpose(0, 2, 3, 1)                       # (N, 64, 64, 1)

    # layer1: Conv(1->32, k=8, s=4, p=3) + BN + ReLU + MaxPool(2); K: 64 -> 128
    s1, b1 = fold_bn(*bn1)
    p1, Hp1, Wp1 = im2col_pool_grouped(x_nhwc, k=8, s=4, p=3, k_pad=128)
    w1m = torch_weight_to_matmul(w1, k_pad=128)                 # (128, 128)
    o1 = conv_bn_relu_pool(p1, w1m, s1, b1)                     # (N*Hp1*Wp1, 128); cols>=32 are exactly 0
    o1 = o1.reshape(N, Hp1, Wp1, COUT_PAD)

    # layer2: Conv(32->16, k=3, s=2, p=1) + BN + ReLU + MaxPool(2)
    # operates directly on the 128-channel (zero-padded) layer-1 output: K = 9*128 = 1152
    s2, b2 = fold_bn(*bn2)
    p2, Hp2, Wp2 = im2col_pool_grouped(o1, k=3, s=2, p=1)
    w2m = torch_weight_to_matmul(w2, cin_pad=COUT_PAD)          # (1152, 128), zero rows for padded cin
    o2 = conv_bn_relu_pool(p2, w2m, s2, b2)                     # (N*Hp2*Wp2, 128)
    o2 = o2[:, :16].reshape(N, Hp2, Wp2, 16)

    # Flatten with PyTorch NCHW ordering: (N, C*H*W)
    return o2.transpose(0, 3, 1, 2).reshape(N, -1)


# ---------------------------------------------------------------------------
# Pure-JAX reference (mirrors the PyTorch module in eval mode; f32 HIGHEST)
# ---------------------------------------------------------------------------
def cnn_reference(x_nchw, w1, w2, bn1, bn2, eps=1e-5):
    def bn(y, params):
        g, b, m, v = params
        return (y - m[None, :, None, None]) / jnp.sqrt(v + eps)[None, :, None, None] \
               * g[None, :, None, None] + b[None, :, None, None]

    def maxpool2(y):
        return lax.reduce_window(y, -jnp.inf, lax.max, (1, 1, 2, 2), (1, 1, 2, 2), 'VALID')

    y = lax.conv_general_dilated(x_nchw, w1, (4, 4), [(3, 3), (3, 3)],
                                 dimension_numbers=('NCHW', 'OIHW', 'NCHW'),
                                 precision=jax.lax.Precision.HIGHEST)
    y = maxpool2(jnp.maximum(bn(y, bn1), 0.0))
    y = lax.conv_general_dilated(y, w2, (2, 2), [(1, 1), (1, 1)],
                                 dimension_numbers=('NCHW', 'OIHW', 'NCHW'),
                                 precision=jax.lax.Precision.HIGHEST)
    y = maxpool2(jnp.maximum(bn(y, bn2), 0.0))
    return y.reshape(y.shape[0], -1)


if __name__ == "__main__":
    key = jax.random.PRNGKey(0)
    kx, kw1, kw2 = jax.random.split(key, 3)

    # Small input consistent with the module: batch=2, 1 channel, 64x64 spatial.
    x = jax.random.normal(kx, (2, 1, 64, 64), dtype=jnp.float32)

    # Deterministic parameter init (PyTorch shapes; bias=False on both convs).
    w1 = 0.1 * jax.random.normal(kw1, (32, 1, 8, 8), dtype=jnp.float32)
    w2 = 0.1 * jax.random.normal(kw2, (16, 32, 3, 3), dtype=jnp.float32)
    bn1 = (jnp.linspace(0.8, 1.2, 32, dtype=jnp.float32),     # gamma
           jnp.linspace(-0.1, 0.1, 32, dtype=jnp.float32),    # beta
           jnp.linspace(-0.05, 0.05, 32, dtype=jnp.float32),  # running_mean
           jnp.linspace(0.9, 1.1, 32, dtype=jnp.float32))     # running_var
    bn2 = (jnp.linspace(0.9, 1.1, 16, dtype=jnp.float32),
           jnp.linspace(-0.05, 0.05, 16, dtype=jnp.float32),
           jnp.linspace(-0.02, 0.02, 16, dtype=jnp.float32),
           jnp.linspace(0.95, 1.05, 16, dtype=jnp.float32))

    out = jax.block_until_ready(cnn_forward(x, w1, w2, bn1, bn2))

    ref = cnn_reference(x, w1, w2, bn1, bn2)
    assert out.shape == ref.shape == (2, 64), (out.shape, ref.shape)
    # Kernel uses default MXU precision (bf16 passes, f32 accumulate); reference is
    # f32 HIGHEST, so the tolerance is loosened accordingly.
    assert jnp.allclose(out, ref, rtol=5e-2, atol=5e-2), float(jnp.max(jnp.abs(out - ref)))

    print("KERNEL_OK")
</pallas_src>

<mosaic_0001>
module attributes {stable_mosaic.version = 11 : i64} {
  func.func @_conv_bn_relu_pool_kernel(%arg0: memref<512x128xf32, #tpu.memory_space<vmem>>, %arg1: memref<128x128xf32, #tpu.memory_space<vmem>>, %arg2: memref<1x128xf32, #tpu.memory_space<vmem>>, %arg3: memref<1x128xf32, #tpu.memory_space<vmem>>, %arg4: memref<128x128xf32, #tpu.memory_space<vmem>>) attributes {dimension_semantics = [], scalar_prefetch = 0 : i64, scratch_operands = 0 : i64, tpu.core_type = #tpu.core_type<tc>} {
    %c0 = arith.constant 0 : index
    %c0_0 = arith.constant 0 : index
    %0 = vector.load %arg0[%c0, %c0_0] : memref<512x128xf32, #tpu.memory_space<vmem>>, vector<512x128xf32>
    %c0_1 = arith.constant 0 : index
    %c0_2 = arith.constant 0 : index
    %1 = vector.load %arg1[%c0_1, %c0_2] : memref<128x128xf32, #tpu.memory_space<vmem>>, vector<128x128xf32>
    %cst = arith.constant dense<0.000000e+00> : vector<512x128xf32>
    %2 = tpu.matmul %0, %1, %cst {dimension_numbers = #tpu.dot_dimension_numbers<[1], [0], [0], [1], [0, 0, 1, 1], [], []>} : vector<512x128xf32>, vector<128x128xf32>, vector<512x128xf32> -> vector<512x128xf32>
    %c0_3 = arith.constant 0 : index
    %c0_4 = arith.constant 0 : index
    %3 = vector.load %arg2[%c0_3, %c0_4] : memref<1x128xf32, #tpu.memory_space<vmem>>, vector<1x128xf32>
    %4 = vector.broadcast %3 : vector<1x128xf32> to vector<512x128xf32>
    %5 = arith.mulf %2, %4 : vector<512x128xf32>
    %c0_5 = arith.constant 0 : index
    %c0_6 = arith.constant 0 : index
    %6 = vector.load %arg3[%c0_5, %c0_6] : memref<1x128xf32, #tpu.memory_space<vmem>>, vector<1x128xf32>
    %7 = vector.broadcast %6 : vector<1x128xf32> to vector<512x128xf32>
    %8 = arith.addf %5, %7 : vector<512x128xf32>
    %cst_7 = arith.constant 0.000000e+00 : f32
    %9 = vector.broadcast %cst_7 : f32 to vector<512x128xf32>
    %10 = arith.maximumf %8, %9 : vector<512x128xf32>
    %11 = vector.extract_strided_slice %10 {offsets = [0, 0], sizes = [128, 128], strides = [1, 1]} : vector<512x128xf32> to vector<128x128xf32>
    %12 = vector.extract_strided_slice %10 {offsets = [128, 0], sizes = [128, 128], strides = [1, 1]} : vector<512x128xf32> to vector<128x128xf32>
    %13 = arith.maximumf %11, %12 : vector<128x128xf32>
    %14 = vector.extract_strided_slice %10 {offsets = [256, 0], sizes = [128, 128], strides = [1, 1]} : vector<512x128xf32> to vector<128x128xf32>
    %15 = vector.extract_strided_slice %10 {offsets = [384, 0], sizes = [128, 128], strides = [1, 1]} : vector<512x128xf32> to vector<128x128xf32>
    %16 = arith.maximumf %14, %15 : vector<128x128xf32>
    %17 = arith.maximumf %13, %16 : vector<128x128xf32>
    %c0_8 = arith.constant 0 : index
    %c0_9 = arith.constant 0 : index
    %18 = vector.load %arg4[%c0_8, %c0_9] : memref<128x128xf32, #tpu.memory_space<vmem>>, vector<128x128xf32>
    tpu.vector_store %arg4[%c0_8, %c0_9], %17 {strides = array<i32>} : memref<128x128xf32, #tpu.memory_space<vmem>>, vector<128x128xf32>,
    return
  }
}

module attributes {stable_mosaic.version = 11 : i64} {
  func.func @_conv_bn_relu_pool_kernel(%arg0: memref<32x1152xf32, #tpu.memory_space<vmem>>, %arg1: memref<1152x128xf32, #tpu.memory_space<vmem>>, %arg2: memref<1x128xf32, #tpu.memory_space<vmem>>, %arg3: memref<1x128xf32, #tpu.memory_space<vmem>>, %arg4: memref<8x128xf32, #tpu.memory_space<vmem>>) attributes {dimension_semantics = [], scalar_prefetch = 0 : i64, scratch_operands = 0 : i64, tpu.core_type = #tpu.core_type<tc>} {
    %c0 = arith.constant 0 : index
    %c0_0 = arith.constant 0 : index
    %0 = vector.load %arg0[%c0, %c0_0] : memref<32x1152xf32, #tpu.memory_space<vmem>>, vector<32x1152xf32>
    %c0_1 = arith.constant 0 : index
    %c0_2 = arith.constant 0 : index
    %1 = vector.load %arg1[%c0_1, %c0_2] : memref<1152x128xf32, #tpu.memory_space<vmem>>, vector<1152x128xf32>
    %cst = arith.constant dense<0.000000e+00> : vector<32x128xf32>
    %2 = tpu.matmul %0, %1, %cst {dimension_numbers = #tpu.dot_dimension_numbers<[1], [0], [0], [1], [0, 0, 1, 1], [], []>} : vector<32x1152xf32>, vector<1152x128xf32>, vector<32x128xf32> -> vector<32x128xf32>
    %c0_3 = arith.constant 0 : index
    %c0_4 = arith.constant 0 : index
    %3 = vector.load %arg2[%c0_3, %c0_4] : memref<1x128xf32, #tpu.memory_space<vmem>>, vector<1x128xf32>
    %4 = vector.broadcast %3 : vector<1x128xf32> to vector<32x128xf32>
    %5 = arith.mulf %2, %4 : vector<32x128xf32>
    %c0_5 = arith.constant 0 : index
    %c0_6 = arith.constant 0 : index
    %6 = vector.load %arg3[%c0_5, %c0_6] : memref<1x128xf32, #tpu.memory_space<vmem>>, vector<1x128xf32>
    %7 = vector.broadcast %6 : vector<1x128xf32> to vector<32x128xf32>
    %8 = arith.addf %5, %7 : vector<32x128xf32>
    %cst_7 = arith.constant 0.000000e+00 : f32
    %9 = vector.broadcast %cst_7 : f32 to vector<32x128xf32>
    %10 = arith.maximumf %8, %9 : vector<32x128xf32>
    %11 = vector.extract_strided_slice %10 {offsets = [0, 0], sizes = [8, 128], strides = [1, 1]} : vector<32x128xf32> to vector<8x128xf32>
    %12 = vector.extract_strided_slice %10 {offsets = [8, 0], sizes = [8, 128], strides = [1, 1]} : vector<32x128xf32> to vector<8x128xf32>
    %13 = arith.maximumf %11, %12 : vector<8x128xf32>
    %14 = vector.extract_strided_slice %10 {offsets = [16, 0], sizes = [8, 128], strides = [1, 1]} : vector<32x128xf32> to vector<8x128xf32>
    %15 = vector.extract_strided_slice %10 {offsets = [24, 0], sizes = [8, 128], strides = [1, 1]} : vector<32x128xf32> to vector<8x128xf32>
    %16 = arith.maximumf %14, %15 : vector<8x128xf32>
    %17 = arith.maximumf %13, %16 : vector<8x128xf32>
    %c0_8 = arith.constant 0 : index
    %c0_9 = arith.constant 0 : index
    %18 = vector.load %arg4[%c0_8, %c0_9] : memref<8x128xf32, #tpu.memory_space<vmem>>, vector<8x128xf32>
    tpu.vector_store %arg4[%c0_8, %c0_9], %17 {strides = array<i32>} : memref<8x128xf32, #tpu.memory_space<vmem>>, vector<8x128xf32>,
    return
  }
}

</mosaic_0001>

<llo_original>
// kernel: cnn_forward.2
$region0: #{cnn_forward.2}
  #allocation0 [shape = 'u32[]', space=smem, size = 0x4, offset = 0x4, fixed_abs, tag = 'smem constant byte address 0x4 - core index']
  #allocation1 [shape = 'u32[144,128]{1,0:T(1,128)}', space=vmem, size = 0x12000, scoped, tag = 'internal scratch']
  %s0 = inlined_call_operand.vmem [shape: f32[512,128], index: 0, kind: input, shape index: {}]
  %s1 = inlined_call_operand.vmem [shape: f32[128,128], index: 1, kind: input, shape index: {}]
  %s2 = inlined_call_operand.vmem [shape: f32[1,128], index: 2, kind: input, shape index: {}]
  %s3 = inlined_call_operand.vmem [shape: f32[1,128], index: 3, kind: input, shape index: {}]
  %s4 = inlined_call_operand.vmem [shape: f32[128,128], index: 4, kind: output, shape index: {}]
  %s5 = sld [smem:[#allocation0]]
  $region26: #{cnn_forward.2} parent=0
    _
  %s7 = ssub.s32 1, %s5
  %s8 = scalar_select 0, %s7, %s5
  // Predicated region
  $region2: #{cnn_forward.2} parent=0 // pred_check
    _
  $region3: #{cnn_forward.2} parent=0 // pred_check_branch
    %10 = sbr.rel (0) target = $region5
  $region4: #{cnn_forward.2} parent=0 // pred_region
    _
  $region5: #{cnn_forward.2} parent=0 // pred_fallthru
    _
  // Predicated region
  $region6: #{cnn_forward.2} parent=0 // pred_check
    _
  $region7: #{cnn_forward.2} parent=0 // pred_check_branch
    %12 = sbr.rel (0) target = $region9
  $region8: #{cnn_forward.2} parent=0 // pred_region
    _
  $region9: #{cnn_forward.2} parent=0 // pred_fallthru
    _
  // Predicated region
  $region10: #{cnn_forward.2} parent=0 // pred_check
    _
  $region11: #{cnn_forward.2} parent=0 // pred_check_branch
    %14 = sbr.rel (0) target = $region13
  $region12: #{cnn_forward.2} parent=0 // pred_region
    _
  $region13: #{cnn_forward.2} parent=0 // pred_fallthru
    _
  // Predicated region
  $region14: #{cnn_forward.2} parent=0 // pred_check
    _
  $region15: #{cnn_forward.2} parent=0 // pred_check_branch
    %16 = sbr.rel (0) target = $region17
  $region16: #{cnn_forward.2} parent=0 // pred_region
    _
  $region17: #{cnn_forward.2} parent=0 // pred_fallthru
    _
  %v17 = vld [vmem:[%s0] sm:$0xff]
  %v18 = vld [vmem:[%s0 + $0x8] sm:$0xff]
  %v19 = vld [vmem:[%s0 + $0x10] sm:$0xff]
  %v20 = vld [vmem:[%s0 + $0x18] sm:$0xff]
  %v21 = vld [vmem:[%s0 + $0x20] sm:$0xff]
  %v22 = vld [vmem:[%s0 + $0x28] sm:$0xff]
  %v23 = vld [vmem:[%s0 + $0x30] sm:$0xff]
  %v24 = vld [vmem:[%s0 + $0x38] sm:$0xff]
  %v25 = vld [vmem:[%s0 + $0x40] sm:$0xff]
  %v26 = vld [vmem:[%s0 + $0x48] sm:$0xff]
  %v27 = vld [vmem:[%s0 + $0x50] sm:$0xff]
  %v28 = vld [vmem:[%s0 + $0x58] sm:$0xff]
  %v29 = vld [vmem:[%s0 + $0x60] sm:$0xff]
  %v30 = vld [vmem:[%s0 + $0x68] sm:$0xff]
  %v31 = vld [vmem:[%s0 + $0x70] sm:$0xff]
  %v32 = vld [vmem:[%s0 + $0x78] sm:$0xff]
  %v33 = vld [vmem:[%s0 + $0x80] sm:$0xff]
  %v34 = vld [vmem:[%s0 + $0x88] sm:$0xff]
  %v35 = vld [vmem:[%s0 + $0x90] sm:$0xff]
  %v36 = vld [vmem:[%s0 + $0x98] sm:$0xff]
  %v37 = vld [vmem:[%s0 + $0xa0] sm:$0xff]
  %v38 = vld [vmem:[%s0 + $0xa8] sm:$0xff]
  %v39 = vld [vmem:[%s0 + $0xb0] sm:$0xff]
  %v40 = vld [vmem:[%s0 + $0xb8] sm:$0xff]
  %v41 = vld [vmem:[%s0 + $0xc0] sm:$0xff]
  %v42 = vld [vmem:[%s0 + $0xc8] sm:$0xff]
  %v43 = vld [vmem:[%s0 + $0xd0] sm:$0xff]
  %v44 = vld [vmem:[%s0 + $0xd8] sm:$0xff]
  %v45 = vld [vmem:[%s0 + $0xe0] sm:$0xff]
  %v46 = vld [vmem:[%s0 + $0xe8] sm:$0xff]
  %v47 = vld [vmem:[%s0 + $0xf0] sm:$0xff]
  %v48 = vld [vmem:[%s0 + $0xf8] sm:$0xff]
  %v49 = vld [vmem:[%s0 + $0x100] sm:$0xff]
  %v50 = vld [vmem:[%s0 + $0x108] sm:$0xff]
  %v51 = vld [vmem:[%s0 + $0x110] sm:$0xff]
  %v52 = vld [vmem:[%s0 + $0x118] sm:$0xff]
  %v53 = vld [vmem:[%s0 + $0x120] sm:$0xff]
  %v54 = vld [vmem:[%s0 + $0x128] sm:$0xff]
  %v55 = vld [vmem:[%s0 + $0x130] sm:$0xff]
  %v56 = vld [vmem:[%s0 + $0x138] sm:$0xff]
  %v57 = vld [vmem:[%s0 + $0x140] sm:$0xff]
  %v58 = vld [vmem:[%s0 + $0x148] sm:$0xff]
  %v59 = vld [vmem:[%s0 + $0x150] sm:$0xff]
  %v60 = vld [vmem:[%s0 + $0x158] sm:$0xff]
  %v61 = vld [vmem:[%s0 + $0x160] sm:$0xff]
  %v62 = vld [vmem:[%s0 + $0x168] sm:$0xff]
  %v63 = vld [vmem:[%s0 + $0x170] sm:$0xff]
  %v64 = vld [vmem:[%s0 + $0x178] sm:$0xff]
  %v65 = vld [vmem:[%s0 + $0x180] sm:$0xff]
  %v66 = vld [vmem:[%s0 + $0x188] sm:$0xff]
  %v67 = vld [vmem:[%s0 + $0x190] sm:$0xff]
  %v68 = vld [vmem:[%s0 + $0x198] sm:$0xff]
  %v69 = vld [vmem:[%s0 + $0x1a0] sm:$0xff]
  %v70 = vld [vmem:[%s0 + $0x1a8] sm:$0xff]
  %v71 = vld [vmem:[%s0 + $0x1b0] sm:$0xff]
  %v72 = vld [vmem:[%s0 + $0x1b8] sm:$0xff]
  %v73 = vld [vmem:[%s0 + $0x1c0] sm:$0xff]
  %v74 = vld [vmem:[%s0 + $0x1c8] sm:$0xff]
  %v75 = vld [vmem:[%s0 + $0x1d0] sm:$0xff]
  %v76 = vld [vmem:[%s0 + $0x1d8] sm:$0xff]
  %v77 = vld [vmem:[%s0 + $0x1e0] sm:$0xff]
  %v78 = vld [vmem:[%s0 + $0x1e8] sm:$0xff]
  %v79 = vld [vmem:[%s0 + $0x1f0] sm:$0xff]
  %v80 = vld [vmem:[%s0 + $0x1f8] sm:$0xff]
  %v81 = vld [vmem:[%s1] sm:$0xff]
  %v82 = vld [vmem:[%s1 + $0x8] sm:$0xff]
  %v83 = vld [vmem:[%s1 + $0x10] sm:$0xff]
  %v84 = vld [vmem:[%s1 + $0x18] sm:$0xff]
  %v85 = vld [vmem:[%s1 + $0x20] sm:$0xff]
  %v86 = vld [vmem:[%s1 + $0x28] sm:$0xff]
  %v87 = vld [vmem:[%s1 + $0x30] sm:$0xff]
  %v88 = vld [vmem:[%s1 + $0x38] sm:$0xff]
  %v89 = vld [vmem:[%s1 + $0x40] sm:$0xff]
  %v90 = vld [vmem:[%s1 + $0x48] sm:$0xff]
  %v91 = vld [vmem:[%s1 + $0x50] sm:$0xff]
  %v92 = vld [vmem:[%s1 + $0x58] sm:$0xff]
  %v93 = vld [vmem:[%s1 + $0x60] sm:$0xff]
  %v94 = vld [vmem:[%s1 + $0x68] sm:$0xff]
  %v95 = vld [vmem:[%s1 + $0x70] sm:$0xff]
  %v96 = vld [vmem:[%s1 + $0x78] sm:$0xff]
  %97 = vmatprep.subr.mxu0 0.0
  %98 = vmatpush1.msra.mxu0 %v81
  %99 = vmatprep.subr.mxu0 0.0
  %100 = vmatpush1.msra.mxu0 %v82
  %101 = vmatprep.subr.mxu0 0.0
  %102 = vmatpush1.msra.mxu0 %v83
  %103 = vmatprep.subr.mxu0 0.0
  %104 = vmatpush1.msra.mxu0 %v84
  %105 = vmatprep.subr.mxu0 0.0
  %106 = vmatpush1.msra.mxu0 %v85
  %107 = vmatprep.subr.mxu0 0.0
  %108 = vmatpush1.msra.mxu0 %v86
  %109 = vmatprep.subr.mxu0 0.0
  %110 = vmatpush1.msra.mxu0 %v87
  %111 = vmatprep.subr.mxu0 0.0
  %112 = vmatpush1.msra.mxu0 %v88
  %113 = vmatprep.subr.mxu0 0.0
  %114 = vmatpush1.msra.mxu0 %v89
  %115 = vmatprep.subr.mxu0 0.0
  %116 = vmatpush1.msra.mxu0 %v90
  %117 = vmatprep.subr.mxu0 0.0
  %118 = vmatpush1.msra.mxu0 %v91
  %119 = vmatprep.subr.mxu0 0.0
  %120 = vmatpush1.msra.mxu0 %v92
  %121 = vmatprep.subr.mxu0 0.0
  %122 = vmatpush1.msra.mxu0 %v93
  %123 = vmatprep.subr.mxu0 0.0
  %124 = vmatpush1.msra.mxu0 %v94
  %125 = vmatprep.subr.mxu0 0.0
  %126 = vmatpush1.msra.mxu0 %v95
  %127 = vmatprep.subr.mxu0 0.0
  %128 = vmatpush1.msra.mxu0 %v96
  %129 = vmatprep.subr.mxu0 0.0
  %130 = vmatpush1.msra.mxu0 0.0
  %131 = vmatprep.subr.mxu0 0.0
  %132 = vmatpush1.msra.mxu0 0.0
  %133 = vmatprep.subr.mxu0 0.0
  %134 = vmatpush1.msra.mxu0 0.0
  %135 = vmatprep.subr.mxu0 0.0
  %136 = vmatpush1.msra.mxu0 0.0
  %137 = vmatprep.subr.mxu0 0.0
  %138 = vmatpush1.msra.mxu0 0.0
  %139 = vmatprep.subr.mxu0 0.0
  %140 = vmatpush1.msra.mxu0 0.0
  %141 = vmatprep.subr.mxu0 0.0
  %142 = vmatpush1.msra.mxu0 0.0
  %143 = vmatprep.subr.mxu0 0.0
  %144 = vmatpush1.msra.mxu0 0.0
  %145 = vmatprep.subr.mxu0 0.0
  %146 = vmatpush1.msra.mxu0 0.0
  %147 = vmatprep.subr.mxu0 0.0
  %148 = vmatpush1.msra.mxu0 0.0
  %149 = vmatprep.subr.mxu0 0.0
  %150 = vmatpush1.msra.mxu0 0.0
  %151 = vmatprep.subr.mxu0 0.0
  %152 = vmatpush1.msra.mxu0 0.0
  %153 = vmatprep.subr.mxu0 0.0
  %154 = vmatpush1.msra.mxu0 0.0
  %155 = vmatprep.subr.mxu0 0.0
  %156 = vmatpush1.msra.mxu0 0.0
  %157 = vmatprep.subr.mxu0 0.0
  %158 = vmatpush1.msra.mxu0 0.0
  %159 = vmatprep.subr.mxu0 0.0
  %160 = vmatpush1.msra.mxu0 0.0
  %161 = vmatprep.mubr.f32.mxu0 0.0
  %162 = vmatmul.mubr.f32.gmra.mrb[0].mxu0 %v17
  %v163 = vpop.f32.mrb[0].mxu0
  %v164 = vadd.f32 0.0, %v163
  %v165 = vpop.f32.mrb[0].mxu0
  %166 = vmatprep.mubr.f32.mxu0 0.0
  %167 = vmatmul.mubr.f32.gmra.mrb[0].mxu0 %v18
  %v168 = vpop.f32.mrb[0].mxu0
  %v169 = vadd.f32 0.0, %v168
  %v170 = vpop.f32.mrb[0].mxu0
  %171 = vmatprep.mubr.f32.mxu0 0.0
  %172 = vmatmul.mubr.f32.gmra.mrb[0].mxu0 %v19
  %v173 = vpop.f32.mrb[0].mxu0
  %v174 = vadd.f32 0.0, %v173
  %v175 = vpop.f32.mrb[0].mxu0
  %176 = vmatprep.mubr.f32.mxu0 0.0
  %177 = vmatmul.mubr.f32.gmra.mrb[0].mxu0 %v20
  %v178 = vpop.f32.mrb[0].mxu0
  %v179 = vadd.f32 0.0, %v178
  %v180 = vpop.f32.mrb[0].mxu0
  %181 = vmatprep.mubr.f32.mxu0 0.0
  %182 = vmatmul.mubr.f32.gmra.mrb[0].mxu0 %v21
  %v183 = vpop.f32.mrb[0].mxu0
  %v184 = vadd.f32 0.0, %v183
  %v185 = vpop.f32.mrb[0].mxu0
  %186 = vmatprep.mubr.f32.mxu0 0.0
  %187 = vmatmul.mubr.f32.gmra.mrb[0].mxu0 %v22
  %v188 = vpop.f32.mrb[0].mxu0
  %v189 = vadd.f32 0.0, %v188
  %v190 = vpop.f32.mrb[0].mxu0
  %191 = vmatprep.mubr.f32.mxu0 0.0
  %192 = vmatmul.mubr.f32.gmra.mrb[0].mxu0 %v23
  %v193 = vpop.f32.mrb[0].mxu0
  %v194 = vadd.f32 0.0, %v193
  %v195 = vpop.f32.mrb[0].mxu0
  %196 = vmatprep.mubr.f32.mxu0 0.0
  %197 = vmatmul.mubr.f32.gmra.mrb[0].mxu0 %v24
  %v198 = vpop.f32.mrb[0].mxu0
  %v199 = vadd.f32 0.0, %v198
  %v200 = vpop.f32.mrb[0].mxu0
  %201 = vmatprep.mubr.f32.mxu0 0.0
  %202 = vmatmul.mubr.f32.gmra.mrb[0].mxu0 %v25
  %v203 = vpop.f32.mrb[0].mxu0
  %v204 = vadd.f32 0.0, %v203
  %v205 = vpop.f32.mrb[0].mxu0
  %206 = vmatprep.mubr.f32.mxu0 0.0
  %207 = vmatmul.mubr.f32.gmra.mrb[0].mxu0 %v26
  %v208 = vpop.f32.mrb[0].mxu0
  %v209 = vadd.f32 0.0, %v208
  %v210 = vpop.f32.mrb[0].mxu0
  %211 = vmatprep.mubr.f32.mxu0 0.0
  %212 = vmatmul.mubr.f32.gmra.mrb[0].mxu0 %v27
  %v213 = vpop.f32.mrb[0].mxu0
  %v214 = vadd.f32 0.0, %v213
  %v215 = vpop.f32.mrb[0].mxu0
  %216 = vmatprep.mubr.f32.mxu0 0.0
  %217 = vmatmul.mubr.f32.gmra.mrb[0].mxu0 %v28
  %v218 = vpop.f32.mrb[0].mxu0
  %v219 = vadd.f32 0.0, %v218
  %v220 = vpop.f32.mrb[0].mxu0
  %221 = vmatprep.mubr.f32.mxu0 0.0
  %222 = vmatmul.mubr.f32.gmra.mrb[0].mxu0 %v29
  %v223 = vpop.f32.mrb[0].mxu0
  %v224 = vadd.f32 0.0, %v223
  %v225 = vpop.f32.mrb[0].mxu0
  %226 = vmatprep.mubr.f32.mxu0 0.0
  %227 = vmatmul.mubr.f32.gmra.mrb[0].mxu0 %v30
  %v228 = vpop.f32.mrb[0].mxu0
  %v229 = vadd.f32 0.0, %v228
  %v230 = vpop.f32.mrb[0].mxu0
  %231 = vmatprep.mubr.f32.mxu0 0.0
  %232 = vmatmul.mubr.f32.gmra.mrb[0].mxu0 %v31
  %v233 = vpop.f32.mrb[0].mxu0
  %v234 = vadd.f32 0.0, %v233
  %v235 = vpop.f32.mrb[0].mxu0
  %236 = vmatprep.mubr.f32.mxu0 0.0
  %237 = vmatmul.mubr.f32.gmra.mrb[0].mxu0 %v32
  %v238 = vpop.f32.mrb[0].mxu0
  %v239 = vadd.f32 0.0, %v238
  %v240 = vpop.f32.mrb[0].mxu0
  %241 = vmatprep.mubr.f32.mxu0 0.0
  %242 = vmatmul.mubr.f32.gmra.mrb[0].mxu0 %v33
  %v243 = vpop.f32.mrb[0].mxu0
  %v244 = vadd.f32 0.0, %v243
  %v245 = vpop.f32.mrb[0].mxu0
  %246 = vmatprep.mubr.f32.mxu0 0.0
  %247 = vmatmul.mubr.f32.gmra.mrb[0].mxu0 %v34
  %v248 = vpop.f32.mrb[0].mxu0
  %v249 = vadd.f32 0.0, %v248
  %v250 = vpop.f32.mrb[0].mxu0
  %251 = vmatprep.mubr.f32.mxu0 0.0
  %252 = vmatmul.mubr.f32.gmra.mrb[0].mxu0 %v35
  %v253 = vpop.f32.mrb[0].mxu0
  %v254 = vadd.f32 0.0, %v253
  %v255 = vpop.f32.mrb[0].mxu0
  %256 = vmatprep.mubr.f32.mxu0 0.0
  %257 = vmatmul.mubr.f32.gmra.mrb[0].mxu0 %v36
  %v258 = vpop.f32.mrb[0].mxu0
  %v259 = vadd.f32 0.0, %v258
  %v260 = vpop.f32.mrb[0].mxu0
  %261 = vmatprep.mubr.f32.mxu0 0.0
  %262 = vmatmul.mubr.f32.gmra.mrb[0].mxu0 %v37
  %v263 = vpop.f32.mrb[0].mxu0
  %v264 = vadd.f32 0.0, %v263
  %v265 = vpop.f32.mrb[0].mxu0
  %266 = vmatprep.mubr.f32.mxu0 0.0
  %267 = vmatmul.mubr.f32.gmra.mrb[0].mxu0 %v38
  %v268 = vpop.f32.mrb[0].mxu0
  %v269 = vadd.f32 0.0, %v268
  %v270 = vpop.f32.mrb[0].mxu0
  %271 = vmatprep.mubr.f32.mxu0 0.0
  %272 = vmatmul.mubr.f32.gmra.mrb[0].mxu0 %v39
  %v273 = vpop.f32.mrb[0].mxu0
  %v274 = vadd.f32 0.0, %v273
  %v275 = vpop.f32.mrb[0].mxu0
  %276 = vmatprep.mubr.f32.mxu0 0.0
  %277 = vmatmul.mubr.f32.gmra.mrb[0].mxu0 %v40
  %v278 = vpop.f32.mrb[0].mxu0
  %v279 = vadd.f32 0.0, %v278
  %v280 = vpop.f32.mrb[0].mxu0
  %281 = vmatprep.mubr.f32.mxu0 0.0
  %282 = vmatmul.mubr.f32.gmra.mrb[0].mxu0 %v41
  %v283 = vpop.f32.mrb[0].mxu0
  %v284 = vadd.f32 0.0, %v283
  %v285 = vpop.f32.mrb[0].mxu0
  %286 = vmatprep.mubr.f32.mxu0 0.0
  %287 = vmatmul.mubr.f32.gmra.mrb[0].mxu0 %v42
  %v288 = vpop.f32.mrb[0].mxu0
  %v289 = vadd.f32 0.0, %v288
  %v290 = vpop.f32.mrb[0].mxu0
  %291 = vmatprep.mubr.f32.mxu0 0.0
  %292 = vmatmul.mubr.f32.gmra.mrb[0].mxu0 %v43
  %v293 = vpop.f32.mrb[0].mxu0
  %v294 = vadd.f32 0.0, %v293
  %v295 = vpop.f32.mrb[0].mxu0
  %296 = vmatprep.mubr.f32.mxu0 0.0
  %297 = vmatmul.mubr.f32.gmra.mrb[0].mxu0 %v44
  %v298 = vpop.f32.mrb[0].mxu0
  %v299 = vadd.f32 0.0, %v298
  %v300 = vpop.f32.mrb[0].mxu0
  %301 = vmatprep.mubr.f32.mxu0 0.0
  %302 = vmatmul.mubr.f32.gmra.mrb[0].mxu0 %v45
  %v303 = vpop.f32.mrb[0].mxu0
  %v304 = vadd.f32 0.0, %v303
  %v305 = vpop.f32.mrb[0].mxu0
  %306 = vmatprep.mubr.f32.mxu0 0.0
  %307 = vmatmul.mubr.f32.gmra.mrb[0].mxu0 %v46
  %v308 = vpop.f32.mrb[0].mxu0
  %v309 = vadd.f32 0.0, %v308
  %v310 = vpop.f32.mrb[0].mxu0
  %311 = vmatprep.mubr.f32.mxu0 0.0
  %312 = vmatmul.mubr.f32.gmra.mrb[0].mxu0 %v47
  %v313 = vpop.f32.mrb[0].mxu0
  %v314 = vadd.f32 0.0, %v313
  %v315 = vpop.f32.mrb[0].mxu0
  %316 = vmatprep.mubr.f32.mxu0 0.0
  %317 = vmatmul.mubr.f32.gmra.mrb[0].mxu0 %v48
  %v318 = vpop.f32.mrb[0].mxu0
  %v319 = vadd.f32 0.0, %v318
  %v320 = vpop.f32.mrb[0].mxu0
  %321 = vmatprep.mubr.f32.mxu0 0.0
  %322 = vmatmul.mubr.f32.gmra.mrb[0].mxu0 %v49
  %v323 = vpop.f32.mrb[0].mxu0
  %v324 = vadd.f32 0.0, %v323
  %v325 = vpop.f32.mrb[0].mxu0
  %326 = vmatprep.mubr.f32.mxu0 0.0
  %327 = vmatmul.mubr.f32.gmra.mrb[0].mxu0 %v50
  %v328 = vpop.f32.mrb[0].mxu0
  %v329 = vadd.f32 0.0, %v328
  %v330 = vpop.f32.mrb[0].mxu0
  %331 = vmatprep.mubr.f32.mxu0 0.0
  %332 = vmatmul.mubr.f32.gmra.mrb[0].mxu0 %v51
  %v333 = vpop.f32.mrb[0].mxu0
  %v334 = vadd.f32 0.0, %v333
  %v335 = vpop.f32.mrb[0].mxu0
  %336 = vmatprep.mubr.f32.mxu0 0.0
  %337 = vmatmul.mubr.f32.gmra.mrb[0].mxu0 %v52
  %v338 = vpop.f32.mrb[0].mxu0
  %v339 = vadd.f32 0.0, %v338
  %v340 = vpop.f32.mrb[0].mxu0
  %341 = vmatprep.mubr.f32.mxu0 0.0
  %342 = vmatmul.mubr.f32.gmra.mrb[0].mxu0 %v53
  %v343 = vpop.f32.mrb[0].mxu0
  %v344 = vadd.f32 0.0, %v343
  %v345 = vpop.f32.mrb[0].mxu0
  %346 = vmatprep.mubr.f32.mxu0 0.0
  %347 = vmatmul.mubr.f32.gmra.mrb[0].mxu0 %v54
  %v348 = vpop.f32.mrb[0].mxu0
  %v349 = vadd.f32 0.0, %v348
  %v350 = vpop.f32.mrb[0].mxu0
  %351 = vmatprep.mubr.f32.mxu0 0.0
  %352 = vmatmul.mubr.f32.gmra.mrb[0].mxu0 %v55
  %v353 = vpop.f32.mrb[0].mxu0
  %v354 = vadd.f32 0.0, %v353
  %v355 = vpop.f32.mrb[0].mxu0
  %356 = vmatprep.mubr.f32.mxu0 0.0
  %357 = vmatmul.mubr.f32.gmra.mrb[0].mxu0 %v56
  %v358 = vpop.f32.mrb[0].mxu0
  %v359 = vadd.f32 0.0, %v358
  %v360 = vpop.f32.mrb[0].mxu0
  %361 = vmatprep.mubr.f32.mxu0 0.0
  %362 = vmatmul.mubr.f32.gmra.mrb[0].mxu0 %v57
  %v363 = vpop.f32.mrb[0].mxu0
  %v364 = vadd.f32 0.0, %v363
  %v365 = vpop.f32.mrb[0].mxu0
  %366 = vmatprep.mubr.f32.mxu0 0.0
  %367 = vmatmul.mubr.f32.gmra.mrb[0].mxu0 %v58
  %v368 = vpop.f32.mrb[0].mxu0
  %v369 = vadd.f32 0.0, %v368
  %v370 = vpop.f32.mrb[0].mxu0
  %371 = vmatprep.mubr.f32.mxu0 0.0
  %372 = vmatmul.mubr.f32.gmra.mrb[0].mxu0 %v59
  %v373 = vpop.f32.mrb[0].mxu0
  %v374 = vadd.f32 0.0, %v373
  %v375 = vpop.f32.mrb[0].mxu0
  %376 = vmatprep.mubr.f32.mxu0 0.0
  %377 = vmatmul.mubr.f32.gmra.mrb[0].mxu0 %v60
  %v378 = vpop.f32.mrb[0].mxu0
  %v379 = vadd.f32 0.0, %v378
  %v380 = vpop.f32.mrb[0].mxu0
  %381 = vmatprep.mubr.f32.mxu0 0.0
  %382 = vmatmul.mubr.f32.gmra.mrb[0].mxu0 %v61
  %v383 = vpop.f32.mrb[0].mxu0
  %v384 = vadd.f32 0.0, %v383
  %v385 = vpop.f32.mrb[0].mxu0
  %386 = vmatprep.mubr.f32.mxu0 0.0
  %387 = vmatmul.mubr.f32.gmra.mrb[0].mxu0 %v62
  %v388 = vpop.f32.mrb[0].mxu0
  %v389 = vadd.f32 0.0, %v388
  %v390 = vpop.f32.mrb[0].mxu0
  %391 = vmatprep.mubr.f32.mxu0 0.0
  %392 = vmatmul.mubr.f32.gmra.mrb[0].mxu0 %v63
  %v393 = vpop.f32.mrb[0].mxu0
  %v394 = vadd.f32 0.0, %v393
  %v395 = vpop.f32.mrb[0].mxu0
  %396 = vmatprep.mubr.f32.mxu0 0.0
  %397 = vmatmul.mubr.f32.gmra.mrb[0].mxu0 %v64
  %v398 = vpop.f32.mrb[0].mxu0
  %v399 = vadd.f32 0.0, %v398
  %v400 = vpop.f32.mrb[0].mxu0
  %401 = vmatprep.mubr.f32.mxu0 0.0
  %402 = vmatmul.mubr.f32.gmra.mrb[0].mxu0 %v65
  %v403 = vpop.f32.mrb[0].mxu0
  %v404 = vadd.f32 0.0, %v403
  %v405 = vpop.f32.mrb[0].mxu0
  %406 = vmatprep.mubr.f32.mxu0 0.0
  %407 = vmatmul.mubr.f32.gmra.mrb[0].mxu0 %v66
  %v408 = vpop.f32.mrb[0].mxu0
  %v409 = vadd.f32 0.0, %v408
  %v410 = vpop.f32.mrb[0].mxu0
  %411 = vmatprep.mubr.f32.mxu0 0.0
  %412 = vmatmul.mubr.f32.gmra.mrb[0].mxu0 %v67
  %v413 = vpop.f32.mrb[0].mxu0
  %v414 = vadd.f32 0.0, %v413
  %v415 = vpop.f32.mrb[0].mxu0
  %416 = vmatprep.mubr.f32.mxu0 0.0
  %417 = vmatmul.mubr.f32.gmra.mrb[0].mxu0 %v68
  %v418 = vpop.f32.mrb[0].mxu0
  %v419 = vadd.f32 0.0, %v418
  %v420 = vpop.f32.mrb[0].mxu0
  %421 = vmatprep.mubr.f32.mxu0 0.0
  %422 = vmatmul.mubr.f32.gmra.mrb[0].mxu0 %v69
  %v423 = vpop.f32.mrb[0].mxu0
  %v424 = vadd.f32 0.0, %v423
  %v425 = vpop.f32.mrb[0].mxu0
  %426 = vmatprep.mubr.f32.mxu0 0.0
  %427 = vmatmul.mubr.f32.gmra.mrb[0].mxu0 %v70
  %v428 = vpop.f32.mrb[0].mxu0
  %v429 = vadd.f32 0.0, %v428
  %v430 = vpop.f32.mrb[0].mxu0
  %431 = vmatprep.mubr.f32.mxu0 0.0
  %432 = vmatmul.mubr.f32.gmra.mrb[0].mxu0 %v71
  %v433 = vpop.f32.mrb[0].mxu0
  %v434 = vadd.f32 0.0, %v433
  %v435 = vpop.f32.mrb[0].mxu0
  %436 = vmatprep.mubr.f32.mxu0 0.0
  %437 = vmatmul.mubr.f32.gmra.mrb[0].mxu0 %v72
  %v438 = vpop.f32.mrb[0].mxu0
  %v439 = vadd.f32 0.0, %v438
  %v440 = vpop.f32.mrb[0].mxu0
  %441 = vmatprep.mubr.f32.mxu0 0.0
  %442 = vmatmul.mubr.f32.gmra.mrb[0].mxu0 %v73
  %v443 = vpop.f32.mrb[0].mxu0
  %v444 = vadd.f32 0.0, %v443
  %v445 = vpop.f32.mrb[0].mxu0
  %446 = vmatprep.mubr.f32.mxu0 0.0
  %447 = vmatmul.mubr.f32.gmra.mrb[0].mxu0 %v74
  %v448 = vpop.f32.mrb[0].mxu0
  %v449 = vadd.f32 0.0, %v448
  %v450 = vpop.f32.mrb[0].mxu0
  %451 = vmatprep.mubr.f32.mxu0 0.0
  %452 = vmatmul.mubr.f32.gmra.mrb[0].mxu0 %v75
  %v453 = vpop.f32.mrb[0].mxu0
  %v454 = vadd.f32 0.0, %v453
  %v455 = vpop.f32.mrb[0].mxu0
  %456 = vmatprep.mubr.f32.mxu0 0.0
  %457 = vmatmul.mubr.f32.gmra.mrb[0].mxu0 %v76
  %v458 = vpop.f32.mrb[0].mxu0
  %v459 = vadd.f32 0.0, %v458
  %v460 = vpop.f32.mrb[0].mxu0
  %461 = vmatprep.mubr.f32.mxu0 0.0
  %462 = vmatmul.mubr.f32.gmra.mrb[0].mxu0 %v77
  %v463 = vpop.f32.mrb[0].mxu0
  %v464 = vadd.f32 0.0, %v463
  %v465 = vpop.f32.mrb[0].mxu0
  %466 = vmatprep.mubr.f32.mxu0 0.0
  %467 = vmatmul.mubr.f32.gmra.mrb[0].mxu0 %v78
  %v468 = vpop.f32.mrb[0].mxu0
  %v469 = vadd.f32 0.0, %v468
  %v470 = vpop.f32.mrb[0].mxu0
  %471 = vmatprep.mubr.f32.mxu0 0.0
  %472 = vmatmul.mubr.f32.gmra.mrb[0].mxu0 %v79
  %v473 = vpop.f32.mrb[0].mxu0
  %v474 = vadd.f32 0.0, %v473
  %v475 = vpop.f32.mrb[0].mxu0
  %476 = vmatprep.mubr.f32.mxu0 0.0
  %477 = vmatmul.mubr.f32.gmra.mrb[0].mxu0 %v80
  %v478 = vpop.f32.mrb[0].mxu0
  %v479 = vadd.f32 0.0, %v478
  %v480 = vpop.f32.mrb[0].mxu0
  %481 = vdwg.mxu0
  %v482 = vld [vmem:[%s2] sm:$0x1]
  %v484 = vlaneseq
  %v485 = vshrl.u32 %v484, 7
  %v486 = vsub.s32 0, %v485
  %v487 = vrot.slane %v482, %v486
  %v489 = vmul.f32 %v164, %v487
  %v490 = vmul.f32 %v169, %v487
  %v491 = vmul.f32 %v174, %v487
  %v492 = vmul.f32 %v179, %v487
  %v493 = vmul.f32 %v184, %v487
  %v494 = vmul.f32 %v189, %v487
  %v495 = vmul.f32 %v194, %v487
  %v496 = vmul.f32 %v199, %v487
  %v497 = vmul.f32 %v204, %v487
  %v498 = vmul.f32 %v209, %v487
  %v499 = vmul.f32 %v214, %v487
  %v500 = vmul.f32 %v219, %v487
  %v501 = vmul.f32 %v224, %v487
  %v502 = vmul.f32 %v229, %v487
  %v503 = vmul.f32 %v234, %v487
  %v504 = vmul.f32 %v239, %v487
  %v505 = vmul.f32 %v244, %v487
  %v506 = vmul.f32 %v249, %v487
  %v507 = vmul.f32 %v254, %v487
  %v508 = vmul.f32 %v259, %v487
  %v509 = vmul.f32 %v264, %v487
  %v510 = vmul.f32 %v269, %v487
  %v511 = vmul.f32 %v274, %v487
  %v512 = vmul.f32 %v279, %v487
  %v513 = vmul.f32 %v284, %v487
  %v514 = vmul.f32 %v289, %v487
  %v515 = vmul.f32 %v294, %v487
  %v516 = vmul.f32 %v299, %v487
  %v517 = vmul.f32 %v304, %v487
  %v518 = vmul.f32 %v309, %v487
  %v519 = vmul.f32 %v314, %v487
  %v520 = vmul.f32 %v319, %v487
  %v521 = vmul.f32 %v324, %v487
  %v522 = vmul.f32 %v329, %v487
  %v523 = vmul.f32 %v334, %v487
  %v524 = vmul.f32 %v339, %v487
  %v525 = vmul.f32 %v344, %v487
  %v526 = vmul.f32 %v349, %v487
  %v527 = vmul.f32 %v354, %v487
  %v528 = vmul.f32 %v359, %v487
  %v529 = vmul.f32 %v364, %v487
  %v530 = vmul.f32 %v369, %v487
  %v531 = vmul.f32 %v374, %v487
  %v532 = vmul.f32 %v379, %v487
  %v533 = vmul.f32 %v384, %v487
  %v534 = vmul.f32 %v389, %v487
  %v535 = vmul.f32 %v394, %v487
  %v536 = vmul.f32 %v399, %v487
  %v537 = vmul.f32 %v404, %v487
  %v538 = vmul.f32 %v409, %v487
  %v539 = vmul.f32 %v414, %v487
  %v540 = vmul.f32 %v419, %v487
  %v541 = vmul.f32 %v424, %v487
  %v542 = vmul.f32 %v429, %v487
  %v543 = vmul.f32 %v434, %v487
  %v544 = vmul.f32 %v439, %v487
  %v545 = vmul.f32 %v444, %v487
  %v546 = vmul.f32 %v449, %v487
  %v547 = vmul.f32 %v454, %v487
  %v548 = vmul.f32 %v459, %v487
  %v549 = vmul.f32 %v464, %v487
  %v550 = vmul.f32 %v469, %v487
  %v551 = vmul.f32 %v474, %v487
  %v552 = vmul.f32 %v479, %v487
  %v553 = vld [vmem:[%s3] sm:$0x1]
  %v555 = vlaneseq
  %v556 = vshrl.u32 %v555, 7
  %v557 = vsub.s32 0, %v556
  %v558 = vrot.slane %v553, %v557
  %v560 = vadd.f32 %v489, %v558
  %v561 = vadd.f32 %v490, %v558
  %v562 = vadd.f32 %v491, %v558
  %v563 = vadd.f32 %v492, %v558
  %v564 = vadd.f32 %v493, %v558
  %v565 = vadd.f32 %v494, %v558
  %v566 = vadd.f32 %v495, %v558
  %v567 = vadd.f32 %v496, %v558
  %v568 = vadd.f32 %v497, %v558
  %v569 = vadd.f32 %v498, %v558
  %v570 = vadd.f32 %v499, %v558
  %v571 = vadd.f32 %v500, %v558
  %v572 = vadd.f32 %v501, %v558
  %v573 = vadd.f32 %v502, %v558
  %v574 = vadd.f32 %v503, %v558
  %v575 = vadd.f32 %v504, %v558
  %v576 = vadd.f32 %v505, %v558
  %v577 = vadd.f32 %v506, %v558
  %v578 = vadd.f32 %v507, %v558
  %v579 = vadd.f32 %v508, %v558
  %v580 = vadd.f32 %v509, %v558
  %v581 = vadd.f32 %v510, %v558
  %v582 = vadd.f32 %v511, %v558
  %v583 = vadd.f32 %v512, %v558
  %v584 = vadd.f32 %v513, %v558
  %v585 = vadd.f32 %v514, %v558
  %v586 = vadd.f32 %v515, %v558
  %v587 = vadd.f32 %v516, %v558
  %v588 = vadd.f32 %v517, %v558
  %v589 = vadd.f32 %v518, %v558
  %v590 = vadd.f32 %v519, %v558
  %v591 = vadd.f32 %v520, %v558
  %v592 = vadd.f32 %v521, %v558
  %v593 = vadd.f32 %v522, %v558
  %v594 = vadd.f32 %v523, %v558
  %v595 = vadd.f32 %v524, %v558
  %v596 = vadd.f32 %v525, %v558
  %v597 = vadd.f32 %v526, %v558
  %v598 = vadd.f32 %v527, %v558
  %v599 = vadd.f32 %v528, %v558
  %v600 = vadd.f32 %v529, %v558
  %v601 = vadd.f32 %v530, %v558
  %v602 = vadd.f32 %v531, %v558
  %v603 = vadd.f32 %v532, %v558
  %v604 = vadd.f32 %v533, %v558
  %v605 = vadd.f32 %v534, %v558
  %v606 = vadd.f32 %v535, %v558
  %v607 = vadd.f32 %v536, %v558
  %v608 = vadd.f32 %v537, %v558
  %v609 = vadd.f32 %v538, %v558
  %v610 = vadd.f32 %v539, %v558
  %v611 = vadd.f32 %v540, %v558
  %v612 = vadd.f32 %v541, %v558
  %v613 = vadd.f32 %v542, %v558
  %v614 = vadd.f32 %v543, %v558
  %v615 = vadd.f32 %v544, %v558
  %v616 = vadd.f32 %v545, %v558
  %v617 = vadd.f32 %v546, %v558
  %v618 = vadd.f32 %v547, %v558
  %v619 = vadd.f32 %v548, %v558
  %v620 = vadd.f32 %v549, %v558
  %v621 = vadd.f32 %v550, %v558
  %v622 = vadd.f32 %v551, %v558
  %v623 = vadd.f32 %v552, %v558
  %v624 = vmax.f32 %v560, 0.0
  %v625 = vmax.f32 %v561, 0.0
  %v626 = vmax.f32 %v562, 0.0
  %v627 = vmax.f32 %v563, 0.0
  %v628 = vmax.f32 %v564, 0.0
  %v629 = vmax.f32 %v565, 0.0
  %v630 = vmax.f32 %v566, 0.0
  %v631 = vmax.f32 %v567, 0.0
  %v632 = vmax.f32 %v568, 0.0
  %v633 = vmax.f32 %v569, 0.0
  %v634 = vmax.f32 %v570, 0.0
  %v635 = vmax.f32 %v571, 0.0
  %v636 = vmax.f32 %v572, 0.0
  %v637 = vmax.f32 %v573, 0.0
  %v638 = vmax.f32 %v574, 0.0
  %v639 = vmax.f32 %v575, 0.0
  %v640 = vmax.f32 %v576, 0.0
  %v641 = vmax.f32 %v577, 0.0
  %v642 = vmax.f32 %v578, 0.0
  %v643 = vmax.f32 %v579, 0.0
  %v644 = vmax.f32 %v580, 0.0
  %v645 = vmax.f32 %v581, 0.0
  %v646 = vmax.f32 %v582, 0.0
  %v647 = vmax.f32 %v583, 0.0
  %v648 = vmax.f32 %v584, 0.0
  %v649 = vmax.f32 %v585, 0.0
  %v650 = vmax.f32 %v586, 0.0
  %v651 = vmax.f32 %v587, 0.0
  %v652 = vmax.f32 %v588, 0.0
  %v653 = vmax.f32 %v589, 0.0
  %v654 = vmax.f32 %v590, 0.0
  %v655 = vmax.f32 %v591, 0.0
  %v656 = vmax.f32 %v592, 0.0
  %v657 = vmax.f32 %v593, 0.0
  %v658 = vmax.f32 %v594, 0.0
  %v659 = vmax.f32 %v595, 0.0
  %v660 = vmax.f32 %v596, 0.0
  %v661 = vmax.f32 %v597, 0.0
  %v662 = vmax.f32 %v598, 0.0
  %v663 = vmax.f32 %v599, 0.0
  %v664 = vmax.f32 %v600, 0.0
  %v665 = vmax.f32 %v601, 0.0
  %v666 = vmax.f32 %v602, 0.0
  %v667 = vmax.f32 %v603, 0.0
  %v668 = vmax.f32 %v604, 0.0
  %v669 = vmax.f32 %v605, 0.0
  %v670 = vmax.f32 %v606, 0.0
  %v671 = vmax.f32 %v607, 0.0
  %v672 = vmax.f32 %v608, 0.0
  %v673 = vmax.f32 %v609, 0.0
  %v674 = vmax.f32 %v610, 0.0
  %v675 = vmax.f32 %v611, 0.0
  %v676 = vmax.f32 %v612, 0.0
  %v677 = vmax.f32 %v613, 0.0
  %v678 = vmax.f32 %v614, 0.0
  %v679 = vmax.f32 %v615, 0.0
  %v680 = vmax.f32 %v616, 0.0
  %v681 = vmax.f32 %v617, 0.0
  %v682 = vmax.f32 %v618, 0.0
  %v683 = vmax.f32 %v619, 0.0
  %v684 = vmax.f32 %v620, 0.0
  %v685 = vmax.f32 %v621, 0.0
  %v686 = vmax.f32 %v622, 0.0
  %v687 = vmax.f32 %v623, 0.0
  %v688 = vmax.f32 %v624, %v640
  %v689 = vmax.f32 %v625, %v641
  %v690 = vmax.f32 %v626, %v642
  %v691 = vmax.f32 %v627, %v643
  %v692 = vmax.f32 %v628, %v644
  %v693 = vmax.f32 %v629, %v645
  %v694 = vmax.f32 %v630, %v646
  %v695 = vmax.f32 %v631, %v647
  %v696 = vmax.f32 %v632, %v648
  %v697 = vmax.f32 %v633, %v649
  %v698 = vmax.f32 %v634, %v650
  %v699 = vmax.f32 %v635, %v651
  %v700 = vmax.f32 %v636, %v652
  %v701 = vmax.f32 %v637, %v653
  %v702 = vmax.f32 %v638, %v654
  %v703 = vmax.f32 %v639, %v655
  %v704 = vmax.f32 %v656, %v672
  %v705 = vmax.f32 %v657, %v673
  %v706 = vmax.f32 %v658, %v674
  %v707 = vmax.f32 %v659, %v675
  %v708 = vmax.f32 %v660, %v676
  %v709 = vmax.f32 %v661, %v677
  %v710 = vmax.f32 %v662, %v678
  %v711 = vmax.f32 %v663, %v679
  %v712 = vmax.f32 %v664, %v680
  %v713 = vmax.f32 %v665, %v681
  %v714 = vmax.f32 %v666, %v682
  %v715 = vmax.f32 %v667, %v683
  %v716 = vmax.f32 %v668, %v684
  %v717 = vmax.f32 %v669, %v685
  %v718 = vmax.f32 %v670, %v686
  %v719 = vmax.f32 %v671, %v687
  %v720 = vmax.f32 %v688, %v704
  %v721 = vmax.f32 %v689, %v705
  %v722 = vmax.f32 %v690, %v706
  %v723 = vmax.f32 %v691, %v707
  %v724 = vmax.f32 %v692, %v708
  %v725 = vmax.f32 %v693, %v709
  %v726 = vmax.f32 %v694, %v710
  %v727 = vmax.f32 %v695, %v711
  %v728 = vmax.f32 %v696, %v712
  %v729 = vmax.f32 %v697, %v713
  %v730 = vmax.f32 %v698, %v714
  %v731 = vmax.f32 %v699, %v715
  %v732 = vmax.f32 %v700, %v716
  %v733 = vmax.f32 %v701, %v717
  %v734 = vmax.f32 %v702, %v718
  %v735 = vmax.f32 %v703, %v719
  %736 = vst [vmem:[%s4] sm:$0xff] %v720
  %737 = vst [vmem:[%s4 + $0x8] sm:$0xff] %v721
  %738 = vst [vmem:[%s4 + $0x10] sm:$0xff] %v722
  %739 = vst [vmem:[%s4 + $0x18] sm:$0xff] %v723
  %740 = vst [vmem:[%s4 + $0x20] sm:$0xff] %v724
  %741 = vst [vmem:[%s4 + $0x28] sm:$0xff] %v725
  %742 = vst [vmem:[%s4 + $0x30] sm:$0xff] %v726
  %743 = vst [vmem:[%s4 + $0x38] sm:$0xff] %v727
  %744 = vst [vmem:[%s4 + $0x40] sm:$0xff] %v728
  %745 = vst [vmem:[%s4 + $0x48] sm:$0xff] %v729
  %746 = vst [vmem:[%s4 + $0x50] sm:$0xff] %v730
  %747 = vst [vmem:[%s4 + $0x58] sm:$0xff] %v731
  %748 = vst [vmem:[%s4 + $0x60] sm:$0xff] %v732
  %749 = vst [vmem:[%s4 + $0x68] sm:$0xff] %v733
  %750 = vst [vmem:[%s4 + $0x70] sm:$0xff] %v734
  %751 = vst [vmem:[%s4 + $0x78] sm:$0xff] %v735
  // Predicated region
  $region18: #{cnn_forward.2} parent=0 // pred_check
    _
  $region19: #{cnn_forward.2} parent=0 // pred_check_branch
    %753 = sbr.rel (0) target = $region21
  $region20: #{cnn_forward.2} parent=0 // pred_region
    _
  $region21: #{cnn_forward.2} parent=0 // pred_fallthru
    _
  // Predicated region
  $region22: #{cnn_forward.2} parent=0 // pred_check
    _
  $region23: #{cnn_forward.2} parent=0 // pred_check_branch
    %755 = sbr.rel (0) target = $region25
  $region24: #{cnn_forward.2} parent=0 // pred_region
    _
  $region25: #{cnn_forward.2} parent=0 // pred_fallthru
    _

// kernel: cnn_forward.3
$region0: #{cnn_forward.3}
  #allocation0 [shape = 'u32[]', space=smem, size = 0x4, offset = 0x4, fixed_abs, tag = 'smem constant byte address 0x4 - core index']
  #allocation1 [shape = 'u32[144,128]{1,0:T(1,128)}', space=vmem, size = 0x12000, scoped, tag = 'internal scratch']
  %s0 = inlined_call_operand.vmem [shape: f32[32,1152], index: 0, kind: input, shape index: {}]
  %s1 = inlined_call_operand.vmem [shape: f32[1152,128], index: 1, kind: input, shape index: {}]
  %s2 = inlined_call_operand.vmem [shape: f32[1,128], index: 2, kind: input, shape index: {}]
  %s3 = inlined_call_operand.vmem [shape: f32[1,128], index: 3, kind: input, shape index: {}]
  %s4 = inlined_call_operand.vmem [shape: f32[8,128], index: 4, kind: output, shape index: {}]
  %s5 = sld [smem:[#allocation0]]
  $region26: #{cnn_forward.3} parent=0
    _
  %s7 = ssub.s32 1, %s5
  %s8 = scalar_select 0, %s7, %s5
  // Predicated region
  $region2: #{cnn_forward.3} parent=0 // pred_check
    _
  $region3: #{cnn_forward.3} parent=0 // pred_check_branch
    %10 = sbr.rel (0) target = $region5
  $region4: #{cnn_forward.3} parent=0 // pred_region
    _
  $region5: #{cnn_forward.3} parent=0 // pred_fallthru
    _
  // Predicated region
  $region6: #{cnn_forward.3} parent=0 // pred_check
    _
  $region7: #{cnn_forward.3} parent=0 // pred_check_branch
    %12 = sbr.rel (0) target = $region9
  $region8: #{cnn_forward.3} parent=0 // pred_region
    _
  $region9: #{cnn_forward.3} parent=0 // pred_fallthru
    _
  // Predicated region
  $region10: #{cnn_forward.3} parent=0 // pred_check
    _
  $region11: #{cnn_forward.3} parent=0 // pred_check_branch
    %14 = sbr.rel (0) target = $region13
  $region12: #{cnn_forward.3} parent=0 // pred_region
    _
  $region13: #{cnn_forward.3} parent=0 // pred_fallthru
    _
  // Predicated region
  $region14: #{cnn_forward.3} parent=0 // pred_check
    _
  $region15: #{cnn_forward.3} parent=0 // pred_check_branch
    %16 = sbr.rel (0) target = $region17
  $region16: #{cnn_forward.3} parent=0 // pred_region
    _
  $region17: #{cnn_forward.3} parent=0 // pred_fallthru
    _
  %v17 = vld [vmem:[%s0] sm:$0xff]
  %v18 = vld [vmem:[%s0 + $0x8] sm:$0xff]
  %v19 = vld [vmem:[%s0 + $0x10] sm:$0xff]
  %v20 = vld [vmem:[%s0 + $0x18] sm:$0xff]
  %v21 = vld [vmem:[%s0 + $0x20] sm:$0xff]
  %v22 = vld [vmem:[%s0 + $0x28] sm:$0xff]
  %v23 = vld [vmem:[%s0 + $0x30] sm:$0xff]
  %v24 = vld [vmem:[%s0 + $0x38] sm:$0xff]
  %v25 = vld [vmem:[%s0 + $0x40] sm:$0xff]
  %v26 = vld [vmem:[%s0 + $0x48] sm:$0xff]
  %v27 = vld [vmem:[%s0 + $0x50] sm:$0xff]
  %v28 = vld [vmem:[%s0 + $0x58] sm:$0xff]
  %v29 = vld [vmem:[%s0 + $0x60] sm:$0xff]
  %v30 = vld [vmem:[%s0 + $0x68] sm:$0xff]
  %v31 = vld [vmem:[%s0 + $0x70] sm:$0xff]
  %v32 = vld [vmem:[%s0 + $0x78] sm:$0xff]
  %v33 = vld [vmem:[%s0 + $0x80] sm:$0xff]
  %v34 = vld [vmem:[%s0 + $0x88] sm:$0xff]
  %v35 = vld [vmem:[%s0 + $0x90] sm:$0xff]
  %v36 = vld [vmem:[%s0 + $0x98] sm:$0xff]
  %v37 = vld [vmem:[%s0 + $0xa0] sm:$0xff]
  %v38 = vld [vmem:[%s0 + $0xa8] sm:$0xff]
  %v39 = vld [vmem:[%s0 + $0xb0] sm:$0xff]
  %v40 = vld [vmem:[%s0 + $0xb8] sm:$0xff]
  %v41 = vld [vmem:[%s0 + $0xc0] sm:$0xff]
  %v42 = vld [vmem:[%s0 + $0xc8] sm:$0xff]
  %v43 = vld [vmem:[%s0 + $0xd0] sm:$0xff]
  %v44 = vld [vmem:[%s0 + $0xd8] sm:$0xff]
  %v45 = vld [vmem:[%s0 + $0xe0] sm:$0xff]
  %v46 = vld [vmem:[%s0 + $0xe8] sm:$0xff]
  %v47 = vld [vmem:[%s0 + $0xf0] sm:$0xff]
  %v48 = vld [vmem:[%s0 + $0xf8] sm:$0xff]
  %v49 = vld [vmem:[%s0 + $0x100] sm:$0xff]
  %v50 = vld [vmem:[%s0 + $0x108] sm:$0xff]
  %v51 = vld [vmem:[%s0 + $0x110] sm:$0xff]
  %v52 = vld [vmem:[%s0 + $0x118] sm:$0xff]
  %v53 = vld [vmem:[%s1] sm:$0xff]
  %v54 = vld [vmem:[%s1 + $0x8] sm:$0xff]
  %v55 = vld [vmem:[%s1 + $0x10] sm:$0xff]
  %v56 = vld [vmem:[%s1 + $0x18] sm:$0xff]
  %v57 = vld [vmem:[%s1 + $0x20] sm:$0xff]
  %v58 = vld [vmem:[%s1 + $0x28] sm:$0xff]
  %v59 = vld [vmem:[%s1 + $0x30] sm:$0xff]
  %v60 = vld [vmem:[%s1 + $0x38] sm:$0xff]
  %v61 = vld [vmem:[%s1 + $0x40] sm:$0xff]
  %v62 = vld [vmem:[%s1 + $0x48] sm:$0xff]
  %v63 = vld [vmem:[%s1 + $0x50] sm:$0xff]
  %v64 = vld [vmem:[%s1 + $0x58] sm:$0xff]
  %v65 = vld [vmem:[%s1 + $0x60] sm:$0xff]
  %v66 = vld [vmem:[%s1 + $0x68] sm:$0xff]
  %v67 = vld [vmem:[%s1 + $0x70] sm:$0xff]
  %v68 = vld [vmem:[%s1 + $0x78] sm:$0xff]
  %v69 = vld [vmem:[%s1 + $0x80] sm:$0xff]
  %v70 = vld [vmem:[%s1 + $0x88] sm:$0xff]
  %v71 = vld [vmem:[%s1 + $0x90] sm:$0xff]
  %v72 = vld [vmem:[%s1 + $0x98] sm:$0xff]
  %v73 = vld [vmem:[%s1 + $0xa0] sm:$0xff]
  %v74 = vld [vmem:[%s1 + $0xa8] sm:$0xff]
  %v75 = vld [vmem:[%s1 + $0xb0] sm:$0xff]
  %v76 = vld [vmem:[%s1 + $0xb8] sm:$0xff]
  %v77 = vld [vmem:[%s1 + $0xc0] sm:$0xff]
  %v78 = vld [vmem:[%s1 + $0xc8] sm:$0xff]
  %v79 = vld [vmem:[%s1 + $0xd0] sm:$0xff]
  %v80 = vld [vmem:[%s1 + $0xd8] sm:$0xff]
  %v81 = vld [vmem:[%s1 + $0xe0] sm:$0xff]
  %v82 = vld [vmem:[%s1 + $0xe8] sm:$0xff]
  %v83 = vld [vmem:[%s1 + $0xf0] sm:$0xff]
  %v84 = vld [vmem:[%s1 + $0xf8] sm:$0xff]
  %v85 = vld [vmem:[%s1 + $0x100] sm:$0xff]
  %v86 = vld [vmem:[%s1 + $0x108] sm:$0xff]
  %v87 = vld [vmem:[%s1 + $0x110] sm:$0xff]
  %v88 = vld [vmem:[%s1 + $0x118] sm:$0xff]
  %v89 = vld [vmem:[%s1 + $0x120] sm:$0xff]
  %v90 = vld [vmem:[%s1 + $0x128] sm:$0xff]
  %v91 = vld [vmem:[%s1 + $0x130] sm:$0xff]
  %v92 = vld [vmem:[%s1 + $0x138] sm:$0xff]
  %v93 = vld [vmem:[%s1 + $0x140] sm:$0xff]
  %v94 = vld [vmem:[%s1 + $0x148] sm:$0xff]
  %v95 = vld [vmem:[%s1 + $0x150] sm:$0xff]
  %v96 = vld [vmem:[%s1 + $0x158] sm:$0xff]
  %v97 = vld [vmem:[%s1 + $0x160] sm:$0xff]
  %v98 = vld [vmem:[%s1 + $0x168] sm:$0xff]
  %v99 = vld [vmem:[%s1 + $0x170] sm:$0xff]
  %v100 = vld [vmem:[%s1 + $0x178] sm:$0xff]
  %v101 = vld [vmem:[%s1 + $0x180] sm:$0xff]
  %v102 = vld [vmem:[%s1 + $0x188] sm:$0xff]
  %v103 = vld [vmem:[%s1 + $0x190] sm:$0xff]
  %v104 = vld [vmem:[%s1 + $0x198] sm:$0xff]
  %v105 = vld [vmem:[%s1 + $0x1a0] sm:$0xff]
  %v106 = vld [vmem:[%s1 + $0x1a8] sm:$0xff]
  %v107 = vld [vmem:[%s1 + $0x1b0] sm:$0xff]
  %v108 = vld [vmem:[%s1 + $0x1b8] sm:$0xff]
  %v109 = vld [vmem:[%s1 + $0x1c0] sm:$0xff]
  %v110 = vld [vmem:[%s1 + $0x1c8] sm:$0xff]
  %v111 = vld [vmem:[%s1 + $0x1d0] sm:$0xff]
  %v112 = vld [vmem:[%s1 + $0x1d8] sm:$0xff]
  %v113 = vld [vmem:[%s1 + $0x1e0] sm:$0xff]
  %v114 = vld [vmem:[%s1 + $0x1e8] sm:$0xff]
  %v115 = vld [vmem:[%s1 + $0x1f0] sm:$0xff]
  %v116 = vld [vmem:[%s1 + $0x1f8] sm:$0xff]
  %v117 = vld [vmem:[%s1 + $0x200] sm:$0xff]
  %v118 = vld [vmem:[%s1 + $0x208] sm:$0xff]
  %v119 = vld [vmem:[%s1 + $0x210] sm:$0xff]
  %v120 = vld [vmem:[%s1 + $0x218] sm:$0xff]
  %v121 = vld [vmem:[%s1 + $0x220] sm:$0xff]
  %v122 = vld [vmem:[%s1 + $0x228] sm:$0xff]
  %v123 = vld [vmem:[%s1 + $0x230] sm:$0xff]
  %v124 = vld [vmem:[%s1 + $0x238] sm:$0xff]
  %v125 = vld [vmem:[%s1 + $0x240] sm:$0xff]
  %v126 = vld [vmem:[%s1 + $0x248] sm:$0xff]
  %v127 = vld [vmem:[%s1 + $0x250] sm:$0xff]
  %v128 = vld [vmem:[%s1 + $0x258] sm:$0xff]
  %v129 = vld [vmem:[%s1 + $0x260] sm:$0xff]
  %v130 = vld [vmem:[%s1 + $0x268] sm:$0xff]
  %v131 = vld [vmem:[%s1 + $0x270] sm:$0xff]
  %v132 = vld [vmem:[%s1 + $0x278] sm:$0xff]
  %v133 = vld [vmem:[%s1 + $0x280] sm:$0xff]
  %v134 = vld [vmem:[%s1 + $0x288] sm:$0xff]
  %v135 = vld [vmem:[%s1 + $0x290] sm:$0xff]
  %v136 = vld [vmem:[%s1 + $0x298] sm:$0xff]
  %v137 = vld [vmem:[%s1 + $0x2a0] sm:$0xff]
  %v138 = vld [vmem:[%s1 + $0x2a8] sm:$0xff]
  %v139 = vld [vmem:[%s1 + $0x2b0] sm:$0xff]
  %v140 = vld [vmem:[%s1 + $0x2b8] sm:$0xff]
  %v141 = vld [vmem:[%s1 + $0x2c0] sm:$0xff]
  %v142 = vld [vmem:[%s1 + $0x2c8] sm:$0xff]
  %v143 = vld [vmem:[%s1 + $0x2d0] sm:$0xff]
  %v144 = vld [vmem:[%s1 + $0x2d8] sm:$0xff]
  %v145 = vld [vmem:[%s1 + $0x2e0] sm:$0xff]
  %v146 = vld [vmem:[%s1 + $0x2e8] sm:$0xff]
  %v147 = vld [vmem:[%s1 + $0x2f0] sm:$0xff]
  %v148 = vld [vmem:[%s1 + $0x2f8] sm:$0xff]
  %v149 = vld [vmem:[%s1 + $0x300] sm:$0xff]
  %v150 = vld [vmem:[%s1 + $0x308] sm:$0xff]
  %v151 = vld [vmem:[%s1 + $0x310] sm:$0xff]
  %v152 = vld [vmem:[%s1 + $0x318] sm:$0xff]
  %v153 = vld [vmem:[%s1 + $0x320] sm:$0xff]
  %v154 = vld [vmem:[%s1 + $0x328] sm:$0xff]
  %v155 = vld [vmem:[%s1 + $0x330] sm:$0xff]
  %v156 = vld [vmem:[%s1 + $0x338] sm:$0xff]
  %v157 = vld [vmem:[%s1 + $0x340] sm:$0xff]
  %v158 = vld [vmem:[%s1 + $0x348] sm:$0xff]
  %v159 = vld [vmem:[%s1 + $0x350] sm:$0xff]
  %v160 = vld [vmem:[%s1 + $0x358] sm:$0xff]
  %v161 = vld [vmem:[%s1 + $0x360] sm:$0xff]
  %v162 = vld [vmem:[%s1 + $0x368] sm:$0xff]
  %v163 = vld [vmem:[%s1 + $0x370] sm:$0xff]
  %v164 = vld [vmem:[%s1 + $0x378] sm:$0xff]
  %v165 = vld [vmem:[%s1 + $0x380] sm:$0xff]
  %v166 = vld [vmem:[%s1 + $0x388] sm:$0xff]
  %v167 = vld [vmem:[%s1 + $0x390] sm:$0xff]
  %v168 = vld [vmem:[%s1 + $0x398] sm:$0xff]
  %v169 = vld [vmem:[%s1 + $0x3a0] sm:$0xff]
  %v170 = vld [vmem:[%s1 + $0x3a8] sm:$0xff]
  %v171 = vld [vmem:[%s1 + $0x3b0] sm:$0xff]
  %v172 = vld [vmem:[%s1 + $0x3b8] sm:$0xff]
  %v173 = vld [vmem:[%s1 + $0x3c0] sm:$0xff]
  %v174 = vld [vmem:[%s1 + $0x3c8] sm:$0xff]
  %v175 = vld [vmem:[%s1 + $0x3d0] sm:$0xff]
  %v176 = vld [vmem:[%s1 + $0x3d8] sm:$0xff]
  %v177 = vld [vmem:[%s1 + $0x3e0] sm:$0xff]
  %v178 = vld [vmem:[%s1 + $0x3e8] sm:$0xff]
  %v179 = vld [vmem:[%s1 + $0x3f0] sm:$0xff]
  %v180 = vld [vmem:[%s1 + $0x3f8] sm:$0xff]
  %v181 = vld [vmem:[%s1 + $0x400] sm:$0xff]
  %v182 = vld [vmem:[%s1 + $0x408] sm:$0xff]
  %v183 = vld [vmem:[%s1 + $0x410] sm:$0xff]
  %v184 = vld [vmem:[%s1 + $0x418] sm:$0xff]
  %v185 = vld [vmem:[%s1 + $0x420] sm:$0xff]
  %v186 = vld [vmem:[%s1 + $0x428] sm:$0xff]
  %v187 = vld [vmem:[%s1 + $0x430] sm:$0xff]
  %v188 = vld [vmem:[%s1 + $0x438] sm:$0xff]
  %v189 = vld [vmem:[%s1 + $0x440] sm:$0xff]
  %v190 = vld [vmem:[%s1 + $0x448] sm:$0xff]
  %v191 = vld [vmem:[%s1 + $0x450] sm:$0xff]
  %v192 = vld [vmem:[%s1 + $0x458] sm:$0xff]
  %v193 = vld [vmem:[%s1 + $0x460] sm:$0xff]
  %v194 = vld [vmem:[%s1 + $0x468] sm:$0xff]
  %v195 = vld [vmem:[%s1 + $0x470] sm:$0xff]
  %v196 = vld [vmem:[%s1 + $0x478] sm:$0xff]
  %197 = vmatprep.subr.mxu0 0.0
  %198 = vmatpush1.msra.mxu0 %v53
  %199 = vmatprep.subr.mxu0 0.0
  %200 = vmatpush1.msra.mxu0 %v54
  %201 = vmatprep.subr.mxu0 0.0
  %202 = vmatpush1.msra.mxu0 %v55
  %203 = vmatprep.subr.mxu0 0.0
  %204 = vmatpush1.msra.mxu0 %v56
  %205 = vmatprep.subr.mxu0 0.0
  %206 = vmatpush1.msra.mxu0 %v57
  %207 = vmatprep.subr.mxu0 0.0
  %208 = vmatpush1.msra.mxu0 %v58
  %209 = vmatprep.subr.mxu0 0.0
  %210 = vmatpush1.msra.mxu0 %v59
  %211 = vmatprep.subr.mxu0 0.0
  %212 = vmatpush1.msra.mxu0 %v60
  %213 = vmatprep.subr.mxu0 0.0
  %214 = vmatpush1.msra.mxu0 %v61
  %215 = vmatprep.subr.mxu0 0.0
  %216 = vmatpush1.msra.mxu0 %v62
  %217 = vmatprep.subr.mxu0 0.0
  %218 = vmatpush1.msra.mxu0 %v63
  %219 = vmatprep.subr.mxu0 0.0
  %220 = vmatpush1.msra.mxu0 %v64
  %221 = vmatprep.subr.mxu0 0.0
  %222 = vmatpush1.msra.mxu0 %v65
  %223 = vmatprep.subr.mxu0 0.0
  %224 = vmatpush1.msra.mxu0 %v66
  %225 = vmatprep.subr.mxu0 0.0
  %226 = vmatpush1.msra.mxu0 %v67
  %227 = vmatprep.subr.mxu0 0.0
  %228 = vmatpush1.msra.mxu0 %v68
  %229 = vmatprep.subr.mxu0 0.0
  %230 = vmatpush1.msra.mxu0 %v69
  %231 = vmatprep.subr.mxu0 0.0
  %232 = vmatpush1.msra.mxu0 %v70
  %233 = vmatprep.subr.mxu0 0.0
  %234 = vmatpush1.msra.mxu0 %v71
  %235 = vmatprep.subr.mxu0 0.0
  %236 = vmatpush1.msra.mxu0 %v72
  %237 = vmatprep.subr.mxu0 0.0
  %238 = vmatpush1.msra.mxu0 %v73
  %239 = vmatprep.subr.mxu0 0.0
  %240 = vmatpush1.msra.mxu0 %v74
  %241 = vmatprep.subr.mxu0 0.0
  %242 = vmatpush1.msra.mxu0 %v75
  %243 = vmatprep.subr.mxu0 0.0
  %244 = vmatpush1.msra.mxu0 %v76
  %245 = vmatprep.subr.mxu0 0.0
  %246 = vmatpush1.msra.mxu0 %v77
  %247 = vmatprep.subr.mxu0 0.0
  %248 = vmatpush1.msra.mxu0 %v78
  %249 = vmatprep.subr.mxu0 0.0
  %250 = vmatpush1.msra.mxu0 %v79
  %251 = vmatprep.subr.mxu0 0.0
  %252 = vmatpush1.msra.mxu0 %v80
  %253 = vmatprep.subr.mxu0 0.0
  %254 = vmatpush1.msra.mxu0 %v81
  %255 = vmatprep.subr.mxu0 0.0
  %256 = vmatpush1.msra.mxu0 %v82
  %257 = vmatprep.subr.mxu0 0.0
  %258 = vmatpush1.msra.mxu0 %v83
  %259 = vmatprep.subr.mxu0 0.0
  %260 = vmatpush1.msra.mxu0 %v84
  %261 = vmatprep.mubr.f32.mxu0 %v18
  %262 = vmatmul.mubr.f32.gmra.mrb[0].mxu0 %v17
  %v263 = vpop.f32.mrb[0].mxu0
  %v264 = vadd.f32 0.0, %v263
  %v265 = vpop.f32.mrb[0].mxu0
  %266 = vmatprep.mubr.f32.mxu0 %v27
  %267 = vmatmul.mubr.f32.gmra.mrb[0].mxu0 %v26
  %v268 = vpop.f32.mrb[0].mxu0
  %v269 = vadd.f32 0.0, %v268
  %v270 = vpop.f32.mrb[0].mxu0
  %271 = vmatprep.mubr.f32.mxu0 %v36
  %272 = vmatmul.mubr.f32.gmra.mrb[0].mxu0 %v35
  %v273 = vpop.f32.mrb[0].mxu0
  %v274 = vadd.f32 0.0, %v273
  %v275 = vpop.f32.mrb[0].mxu0
  %276 = vmatprep.mubr.f32.mxu0 %v45
  %277 = vmatmul.mubr.f32.gmra.mrb[0].mxu0 %v44
  %v278 = vpop.f32.mrb[0].mxu0
  %v279 = vadd.f32 0.0, %v278
  %v280 = vpop.f32.mrb[0].mxu0
  %281 = vdwg.mxu0
  %282 = vmatprep.subr.mxu0 0.0
  %283 = vmatpush1.msra.mxu0 %v85
  %284 = vmatprep.subr.mxu0 0.0
  %285 = vmatpush1.msra.mxu0 %v86
  %286 = vmatprep.subr.mxu0 0.0
  %287 = vmatpush1.msra.mxu0 %v87
  %288 = vmatprep.subr.mxu0 0.0
  %289 = vmatpush1.msra.mxu0 %v88
  %290 = vmatprep.subr.mxu0 0.0
  %291 = vmatpush1.msra.mxu0 %v89
  %292 = vmatprep.subr.mxu0 0.0
  %293 = vmatpush1.msra.mxu0 %v90
  %294 = vmatprep.subr.mxu0 0.0
  %295 = vmatpush1.msra.mxu0 %v91
  %296 = vmatprep.subr.mxu0 0.0
  %297 = vmatpush1.msra.mxu0 %v92
  %298 = vmatprep.subr.mxu0 0.0
  %299 = vmatpush1.msra.mxu0 %v93
  %300 = vmatprep.subr.mxu0 0.0
  %301 = vmatpush1.msra.mxu0 %v94
  %302 = vmatprep.subr.mxu0 0.0
  %303 = vmatpush1.msra.mxu0 %v95
  %304 = vmatprep.subr.mxu0 0.0
  %305 = vmatpush1.msra.mxu0 %v96
  %306 = vmatprep.subr.mxu0 0.0
  %307 = vmatpush1.msra.mxu0 %v97
  %308 = vmatprep.subr.mxu0 0.0
  %309 = vmatpush1.msra.mxu0 %v98
  %310 = vmatprep.subr.mxu0 0.0
  %311 = vmatpush1.msra.mxu0 %v99
  %312 = vmatprep.subr.mxu0 0.0
  %313 = vmatpush1.msra.mxu0 %v100
  %314 = vmatprep.subr.mxu0 0.0
  %315 = vmatpush1.msra.mxu0 %v101
  %316 = vmatprep.subr.mxu0 0.0
  %317 = vmatpush1.msra.mxu0 %v102
  %318 = vmatprep.subr.mxu0 0.0
  %319 = vmatpush1.msra.mxu0 %v103
  %320 = vmatprep.subr.mxu0 0.0
  %321 = vmatpush1.msra.mxu0 %v104
  %322 = vmatprep.subr.mxu0 0.0
  %323 = vmatpush1.msra.mxu0 %v105
  %324 = vmatprep.subr.mxu0 0.0
  %325 = vmatpush1.msra.mxu0 %v106
  %326 = vmatprep.subr.mxu0 0.0
  %327 = vmatpush1.msra.mxu0 %v107
  %328 = vmatprep.subr.mxu0 0.0
  %329 = vmatpush1.msra.mxu0 %v108
  %330 = vmatprep.subr.mxu0 0.0
  %331 = vmatpush1.msra.mxu0 %v109
  %332 = vmatprep.subr.mxu0 0.0
  %333 = vmatpush1.msra.mxu0 %v110
  %334 = vmatprep.subr.mxu0 0.0
  %335 = vmatpush1.msra.mxu0 %v111
  %336 = vmatprep.subr.mxu0 0.0
  %337 = vmatpush1.msra.mxu0 %v112
  %338 = vmatprep.subr.mxu0 0.0
  %339 = vmatpush1.msra.mxu0 %v113
  %340 = vmatprep.subr.mxu0 0.0
  %341 = vmatpush1.msra.mxu0 %v114
  %342 = vmatprep.subr.mxu0 0.0
  %343 = vmatpush1.msra.mxu0 %v115
  %344 = vmatprep.subr.mxu0 0.0
  %345 = vmatpush1.msra.mxu0 %v116
  %346 = vmatprep.mubr.f32.mxu0 %v20
  %347 = vmatmul.mubr.f32.gmra.mrb[0].mxu0 %v19
  %v348 = vpop.f32.mrb[0].mxu0
  %v349 = vadd.f32 %v264, %v348
  %v350 = vpop.f32.mrb[0].mxu0
  %351 = vmatprep.mubr.f32.mxu0 %v29
  %352 = vmatmul.mubr.f32.gmra.mrb[0].mxu0 %v28
  %v353 = vpop.f32.mrb[0].mxu0
  %v354 = vadd.f32 %v269, %v353
  %v355 = vpop.f32.mrb[0].mxu0
  %356 = vmatprep.mubr.f32.mxu0 %v38
  %357 = vmatmul.mubr.f32.gmra.mrb[0].mxu0 %v37
  %v358 = vpop.f32.mrb[0].mxu0
  %v359 = vadd.f32 %v274, %v358
  %v360 = vpop.f32.mrb[0].mxu0
  %361 = vmatprep.mubr.f32.mxu0 %v47
  %362 = vmatmul.mubr.f32.gmra.mrb[0].mxu0 %v46
  %v363 = vpop.f32.mrb[0].mxu0
  %v364 = vadd.f32 %v279, %v363
  %v365 = vpop.f32.mrb[0].mxu0
  %366 = vdwg.mxu0
  %367 = vmatprep.subr.mxu0 0.0
  %368 = vmatpush1.msra.mxu0 %v117
  %369 = vmatprep.subr.mxu0 0.0
  %370 = vmatpush1.msra.mxu0 %v118
  %371 = vmatprep.subr.mxu0 0.0
  %372 = vmatpush1.msra.mxu0 %v119
  %373 = vmatprep.subr.mxu0 0.0
  %374 = vmatpush1.msra.mxu0 %v120
  %375 = vmatprep.subr.mxu0 0.0
  %376 = vmatpush1.msra.mxu0 %v121
  %377 = vmatprep.subr.mxu0 0.0
  %378 = vmatpush1.msra.mxu0 %v122
  %379 = vmatprep.subr.mxu0 0.0
  %380 = vmatpush1.msra.mxu0 %v123
  %381 = vmatprep.subr.mxu0 0.0
  %382 = vmatpush1.msra.mxu0 %v124
  %383 = vmatprep.subr.mxu0 0.0
  %384 = vmatpush1.msra.mxu0 %v125
  %385 = vmatprep.subr.mxu0 0.0
  %386 = vmatpush1.msra.mxu0 %v126
  %387 = vmatprep.subr.mxu0 0.0
  %388 = vmatpush1.msra.mxu0 %v127
  %389 = vmatprep.subr.mxu0 0.0
  %390 = vmatpush1.msra.mxu0 %v128
  %391 = vmatprep.subr.mxu0 0.0
  %392 = vmatpush1.msra.mxu0 %v129
  %393 = vmatprep.subr.mxu0 0.0
  %394 = vmatpush1.msra.mxu0 %v130
  %395 = vmatprep.subr.mxu0 0.0
  %396 = vmatpush1.msra.mxu0 %v131
  %397 = vmatprep.subr.mxu0 0.0
  %398 = vmatpush1.msra.mxu0 %v132
  %399 = vmatprep.subr.mxu0 0.0
  %400 = vmatpush1.msra.mxu0 %v133
  %401 = vmatprep.subr.mxu0 0.0
  %402 = vmatpush1.msra.mxu0 %v134
  %403 = vmatprep.subr.mxu0 0.0
  %404 = vmatpush1.msra.mxu0 %v135
  %405 = vmatprep.subr.mxu0 0.0
  %406 = vmatpush1.msra.mxu0 %v136
  %407 = vmatprep.subr.mxu0 0.0
  %408 = vmatpush1.msra.mxu0 %v137
  %409 = vmatprep.subr.mxu0 0.0
  %410 = vmatpush1.msra.mxu0 %v138
  %411 = vmatprep.subr.mxu0 0.0
  %412 = vmatpush1.msra.mxu0 %v139
  %413 = vmatprep.subr.mxu0 0.0
  %414 = vmatpush1.msra.mxu0 %v140
  %415 = vmatprep.subr.mxu0 0.0
  %416 = vmatpush1.msra.mxu0 %v141
  %417 = vmatprep.subr.mxu0 0.0
  %418 = vmatpush1.msra.mxu0 %v142
  %419 = vmatprep.subr.mxu0 0.0
  %420 = vmatpush1.msra.mxu0 %v143
  %421 = vmatprep.subr.mxu0 0.0
  %422 = vmatpush1.msra.mxu0 %v144
  %423 = vmatprep.subr.mxu0 0.0
  %424 = vmatpush1.msra.mxu0 %v145
  %425 = vmatprep.subr.mxu0 0.0
  %426 = vmatpush1.msra.mxu0 %v146
  %427 = vmatprep.subr.mxu0 0.0
  %428 = vmatpush1.msra.mxu0 %v147
  %429 = vmatprep.subr.mxu0 0.0
  %430 = vmatpush1.msra.mxu0 %v148
  %431 = vmatprep.mubr.f32.mxu0 %v22
  %432 = vmatmul.mubr.f32.gmra.mrb[0].mxu0 %v21
  %v433 = vpop.f32.mrb[0].mxu0
  %v434 = vadd.f32 %v349, %v433
  %v435 = vpop.f32.mrb[0].mxu0
  %436 = vmatprep.mubr.f32.mxu0 %v31
  %437 = vmatmul.mubr.f32.gmra.mrb[0].mxu0 %v30
  %v438 = vpop.f32.mrb[0].mxu0
  %v439 = vadd.f32 %v354, %v438
  %v440 = vpop.f32.mrb[0].mxu0
  %441 = vmatprep.mubr.f32.mxu0 %v40
  %442 = vmatmul.mubr.f32.gmra.mrb[0].mxu0 %v39
  %v443 = vpop.f32.mrb[0].mxu0
  %v444 = vadd.f32 %v359, %v443
  %v445 = vpop.f32.mrb[0].mxu0
  %446 = vmatprep.mubr.f32.mxu0 %v49
  %447 = vmatmul.mubr.f32.gmra.mrb[0].mxu0 %v48
  %v448 = vpop.f32.mrb[0].mxu0
  %v449 = vadd.f32 %v364, %v448
  %v450 = vpop.f32.mrb[0].mxu0
  %451 = vdwg.mxu0
  %452 = vmatprep.subr.mxu0 0.0
  %453 = vmatpush1.msra.mxu0 %v149
  %454 = vmatprep.subr.mxu0 0.0
  %455 = vmatpush1.msra.mxu0 %v150
  %456 = vmatprep.subr.mxu0 0.0
  %457 = vmatpush1.msra.mxu0 %v151
  %458 = vmatprep.subr.mxu0 0.0
  %459 = vmatpush1.msra.mxu0 %v152
  %460 = vmatprep.subr.mxu0 0.0
  %461 = vmatpush1.msra.mxu0 %v153
  %462 = vmatprep.subr.mxu0 0.0
  %463 = vmatpush1.msra.mxu0 %v154
  %464 = vmatprep.subr.mxu0 0.0
  %465 = vmatpush1.msra.mxu0 %v155
  %466 = vmatprep.subr.mxu0 0.0
  %467 = vmatpush1.msra.mxu0 %v156
  %468 = vmatprep.subr.mxu0 0.0
  %469 = vmatpush1.msra.mxu0 %v157
  %470 = vmatprep.subr.mxu0 0.0
  %471 = vmatpush1.msra.mxu0 %v158
  %472 = vmatprep.subr.mxu0 0.0
  %473 = vmatpush1.msra.mxu0 %v159
  %474 = vmatprep.subr.mxu0 0.0
  %475 = vmatpush1.msra.mxu0 %v160
  %476 = vmatprep.subr.mxu0 0.0
  %477 = vmatpush1.msra.mxu0 %v161
  %478 = vmatprep.subr.mxu0 0.0
  %479 = vmatpush1.msra.mxu0 %v162
  %480 = vmatprep.subr.mxu0 0.0
  %481 = vmatpush1.msra.mxu0 %v163
  %482 = vmatprep.subr.mxu0 0.0
  %483 = vmatpush1.msra.mxu0 %v164
  %484 = vmatprep.subr.mxu0 0.0
  %485 = vmatpush1.msra.mxu0 %v165
  %486 = vmatprep.subr.mxu0 0.0
  %487 = vmatpush1.msra.mxu0 %v166
  %488 = vmatprep.subr.mxu0 0.0
  %489 = vmatpush1.msra.mxu0 %v167
  %490 = vmatprep.subr.mxu0 0.0
  %491 = vmatpush1.msra.mxu0 %v168
  %492 = vmatprep.subr.mxu0 0.0
  %493 = vmatpush1.msra.mxu0 %v169
  %494 = vmatprep.subr.mxu0 0.0
  %495 = vmatpush1.msra.mxu0 %v170
  %496 = vmatprep.subr.mxu0 0.0
  %497 = vmatpush1.msra.mxu0 %v171
  %498 = vmatprep.subr.mxu0 0.0
  %499 = vmatpush1.msra.mxu0 %v172
  %500 = vmatprep.subr.mxu0 0.0
  %501 = vmatpush1.msra.mxu0 %v173
  %502 = vmatprep.subr.mxu0 0.0
  %503 = vmatpush1.msra.mxu0 %v174
  %504 = vmatprep.subr.mxu0 0.0
  %505 = vmatpush1.msra.mxu0 %v175
  %506 = vmatprep.subr.mxu0 0.0
  %507 = vmatpush1.msra.mxu0 %v176
  %508 = vmatprep.subr.mxu0 0.0
  %509 = vmatpush1.msra.mxu0 %v177
  %510 = vmatprep.subr.mxu0 0.0
  %511 = vmatpush1.msra.mxu0 %v178
  %512 = vmatprep.subr.mxu0 0.0
  %513 = vmatpush1.msra.mxu0 %v179
  %514 = vmatprep.subr.mxu0 0.0
  %515 = vmatpush1.msra.mxu0 %v180
  %516 = vmatprep.mubr.f32.mxu0 %v24
  %517 = vmatmul.mubr.f32.gmra.mrb[0].mxu0 %v23
  %v518 = vpop.f32.mrb[0].mxu0
  %v519 = vadd.f32 %v434, %v518
  %v520 = vpop.f32.mrb[0].mxu0
  %521 = vmatprep.mubr.f32.mxu0 %v33
  %522 = vmatmul.mubr.f32.gmra.mrb[0].mxu0 %v32
  %v523 = vpop.f32.mrb[0].mxu0
  %v524 = vadd.f32 %v439, %v523
  %v525 = vpop.f32.mrb[0].mxu0
  %526 = vmatprep.mubr.f32.mxu0 %v42
  %527 = vmatmul.mubr.f32.gmra.mrb[0].mxu0 %v41
  %v528 = vpop.f32.mrb[0].mxu0
  %v529 = vadd.f32 %v444, %v528
  %v530 = vpop.f32.mrb[0].mxu0
  %531 = vmatprep.mubr.f32.mxu0 %v51
  %532 = vmatmul.mubr.f32.gmra.mrb[0].mxu0 %v50
  %v533 = vpop.f32.mrb[0].mxu0
  %v534 = vadd.f32 %v449, %v533
  %v535 = vpop.f32.mrb[0].mxu0
  %536 = vdwg.mxu0
  %537 = vmatprep.subr.mxu0 0.0
  %538 = vmatpush1.msra.mxu0 %v181
  %539 = vmatprep.subr.mxu0 0.0
  %540 = vmatpush1.msra.mxu0 %v182
  %541 = vmatprep.subr.mxu0 0.0
  %542 = vmatpush1.msra.mxu0 %v183
  %543 = vmatprep.subr.mxu0 0.0
  %544 = vmatpush1.msra.mxu0 %v184
  %545 = vmatprep.subr.mxu0 0.0
  %546 = vmatpush1.msra.mxu0 %v185
  %547 = vmatprep.subr.mxu0 0.0
  %548 = vmatpush1.msra.mxu0 %v186
  %549 = vmatprep.subr.mxu0 0.0
  %550 = vmatpush1.msra.mxu0 %v187
  %551 = vmatprep.subr.mxu0 0.0
  %552 = vmatpush1.msra.mxu0 %v188
  %553 = vmatprep.subr.mxu0 0.0
  %554 = vmatpush1.msra.mxu0 %v189
  %555 = vmatprep.subr.mxu0 0.0
  %556 = vmatpush1.msra.mxu0 %v190
  %557 = vmatprep.subr.mxu0 0.0
  %558 = vmatpush1.msra.mxu0 %v191
  %559 = vmatprep.subr.mxu0 0.0
  %560 = vmatpush1.msra.mxu0 %v192
  %561 = vmatprep.subr.mxu0 0.0
  %562 = vmatpush1.msra.mxu0 %v193
  %563 = vmatprep.subr.mxu0 0.0
  %564 = vmatpush1.msra.mxu0 %v194
  %565 = vmatprep.subr.mxu0 0.0
  %566 = vmatpush1.msra.mxu0 %v195
  %567 = vmatprep.subr.mxu0 0.0
  %568 = vmatpush1.msra.mxu0 %v196
  %569 = vmatprep.subr.mxu0 0.0
  %570 = vmatpush1.msra.mxu0 0.0
  %571 = vmatprep.subr.mxu0 0.0
  %572 = vmatpush1.msra.mxu0 0.0
  %573 = vmatprep.subr.mxu0 0.0
  %574 = vmatpush1.msra.mxu0 0.0
  %575 = vmatprep.subr.mxu0 0.0
  %576 = vmatpush1.msra.mxu0 0.0
  %577 = vmatprep.subr.mxu0 0.0
  %578 = vmatpush1.msra.mxu0 0.0
  %579 = vmatprep.subr.mxu0 0.0
  %580 = vmatpush1.msra.mxu0 0.0
  %581 = vmatprep.subr.mxu0 0.0
  %582 = vmatpush1.msra.mxu0 0.0
  %583 = vmatprep.subr.mxu0 0.0
  %584 = vmatpush1.msra.mxu0 0.0
  %585 = vmatprep.subr.mxu0 0.0
  %586 = vmatpush1.msra.mxu0 0.0
  %587 = vmatprep.subr.mxu0 0.0
  %588 = vmatpush1.msra.mxu0 0.0
  %589 = vmatprep.subr.mxu0 0.0
  %590 = vmatpush1.msra.mxu0 0.0
  %591 = vmatprep.subr.mxu0 0.0
  %592 = vmatpush1.msra.mxu0 0.0
  %593 = vmatprep.subr.mxu0 0.0
  %594 = vmatpush1.msra.mxu0 0.0
  %595 = vmatprep.subr.mxu0 0.0
  %596 = vmatpush1.msra.mxu0 0.0
  %597 = vmatprep.subr.mxu0 0.0
  %598 = vmatpush1.msra.mxu0 0.0
  %599 = vmatprep.subr.mxu0 0.0
  %600 = vmatpush1.msra.mxu0 0.0
  %601 = vmatprep.mubr.f32.mxu0 0.0
  %602 = vmatmul.mubr.f32.gmra.mrb[0].mxu0 %v25
  %v603 = vpop.f32.mrb[0].mxu0
  %v604 = vadd.f32 %v519, %v603
  %v605 = vpop.f32.mrb[0].mxu0
  %606 = vmatprep.mubr.f32.mxu0 0.0
  %607 = vmatmul.mubr.f32.gmra.mrb[0].mxu0 %v34
  %v608 = vpop.f32.mrb[0].mxu0
  %v609 = vadd.f32 %v524, %v608
  %v610 = vpop.f32.mrb[0].mxu0
  %611 = vmatprep.mubr.f32.mxu0 0.0
  %612 = vmatmul.mubr.f32.gmra.mrb[0].mxu0 %v43
  %v613 = vpop.f32.mrb[0].mxu0
  %v614 = vadd.f32 %v529, %v613
  %v615 = vpop.f32.mrb[0].mxu0
  %616 = vmatprep.mubr.f32.mxu0 0.0
  %617 = vmatmul.mubr.f32.gmra.mrb[0].mxu0 %v52
  %v618 = vpop.f32.mrb[0].mxu0
  %v619 = vadd.f32 %v534, %v618
  %v620 = vpop.f32.mrb[0].mxu0
  %621 = vdwg.mxu0
  %v622 = vld [vmem:[%s2] sm:$0x1]
  %v624 = vlaneseq
  %v625 = vshrl.u32 %v624, 7
  %v626 = vsub.s32 0, %v625
  %v627 = vrot.slane %v622, %v626
  %v629 = vmul.f32 %v604, %v627
  %v630 = vmul.f32 %v609, %v627
  %v631 = vmul.f32 %v614, %v627
  %v632 = vmul.f32 %v619, %v627
  %v633 = vld [vmem:[%s3] sm:$0x1]
  %v635 = vlaneseq
  %v636 = vshrl.u32 %v635, 7
  %v637 = vsub.s32 0, %v636
  %v638 = vrot.slane %v633, %v637
  %v640 = vadd.f32 %v629, %v638
  %v641 = vadd.f32 %v630, %v638
  %v642 = vadd.f32 %v631, %v638
  %v643 = vadd.f32 %v632, %v638
  %v644 = vmax.f32 %v640, 0.0
  %v645 = vmax.f32 %v641, 0.0
  %v646 = vmax.f32 %v642, 0.0
  %v647 = vmax.f32 %v643, 0.0
  %v648 = vmax.f32 %v644, %v645
  %v649 = vmax.f32 %v646, %v647
  %v650 = vmax.f32 %v648, %v649
  %651 = vst [vmem:[%s4] sm:$0xff] %v650
  // Predicated region
  $region18: #{cnn_forward.3} parent=0 // pred_check
    _
  $region19: #{cnn_forward.3} parent=0 // pred_check_branch
    %653 = sbr.rel (0) target = $region21
  $region20: #{cnn_forward.3} parent=0 // pred_region
    _
  $region21: #{cnn_forward.3} parent=0 // pred_fallthru
    _
  // Predicated region
  $region22: #{cnn_forward.3} parent=0 // pred_check
    _
  $region23: #{cnn_forward.3} parent=0 // pred_check_branch
    %655 = sbr.rel (0) target = $region25
  $region24: #{cnn_forward.3} parent=0 // pred_region
    _
  $region25: #{cnn_forward.3} parent=0 // pred_fallthru
    _

</llo_original>
